<compile_context>
chip_gen: v7x
topology: tpu7x:2x2x1
jax: 0.10.0
libtpu: 0.0.40
codegen_flags: <defaults>
</compile_context>

<pallas_src>
import jax
import jax.numpy as jnp
from jax.experimental import pallas as pl
from jax.experimental.pallas import tpu as pltpu


# ---------------------------------------------------------------------------
# Kernels
# ---------------------------------------------------------------------------
def _odeg_kernel_fullrows(x_ref, adj_ref, wtot_ref, o_ref):
    """One grid step when the node dim is NOT row-tiled.

    x_ref:    (Bb, Np, TFp)  matmul dtype (bf16 by default)
    adj_ref:  (Np, Np)       time*sigmoid(alpha)/2-scaled adjacency
    wtot_ref: (TFp, TFp)     fused feature/temporal/Euler operator
    o_ref:    (Bb, Np, TFp)  float32
    """
    adj = adj_ref[...]
    wtot = wtot_ref[...]

    def body(b, carry):
        xb = x_ref[b]                                                  # (Np, TFp)
        zw = jnp.dot(xb, wtot, preferred_element_type=jnp.float32)     # fused op
        za = jnp.dot(adj, xb, preferred_element_type=jnp.float32)      # graph term
        o_ref[b] = jnp.maximum(zw + za, 0.0)
        return carry

    jax.lax.fori_loop(0, x_ref.shape[0], body, 0, unroll=True)


def _odeg_kernel_rowtiled(x_ref, xrows_ref, adj_ref, wtot_ref, o_ref):
    """One grid step when output node rows are tiled (second 'parallel' grid axis).

    `xrows_ref` is the *same* HBM array as `x_ref`, delivered through a node-tiled
    BlockSpec, so no in-kernel dynamic row slicing is needed. The graph-diffusion
    term still contracts over every node, hence the full-node x_ref.

    x_ref:     (Bb, Np, TFp)   xrows_ref: (Bb, Nt, TFp)
    adj_ref:   (Nt, Np)        wtot_ref:  (TFp, TFp)
    o_ref:     (Bb, Nt, TFp) float32
    """
    adj = adj_ref[...]
    wtot = wtot_ref[...]

    def body(b, carry):
        zw = jnp.dot(xrows_ref[b], wtot, preferred_element_type=jnp.float32)
        za = jnp.dot(adj, x_ref[b], preferred_element_type=jnp.float32)
        o_ref[b] = jnp.maximum(zw + za, 0.0)
        return carry

    jax.lax.fori_loop(0, x_ref.shape[0], body, 0, unroll=True)


# ---------------------------------------------------------------------------
# Tiling helpers
# ---------------------------------------------------------------------------
def _round_up(v, m):
    return -(-v // m) * m


def _vmem_budget_bytes():
    """~60% of this chip's per-core VMEM (v5e/v6e: 128 MiB, v7x: 64 MiB)."""
    try:
        cap = getattr(pltpu.get_tpu_info(), "vmem_capacity_bytes", None)
    except Exception:  # hardware query is best-effort
        cap = None
    if not cap:
        cap = 64 * 1024 * 1024          # conservative default = v7x per-TC VMEM
    return int(cap * 0.6)               # ~40% headroom for compiler scratch


def _pick_batch_block(batch, n_pad, tf_pad, in_bytes, out_bytes, budget, cap=8):
    """VMEM-aware batch tile (Bb) and padded batch (Bp).

    Largest Bb <= cap whose double-buffered x/out pipeline blocks + resident
    operators + in-kernel temporaries fit `budget`; among feasible Bb pick the one
    minimizing (batch grid steps, padded batch) so prime / non-divisible batches
    don't collapse to Bb=1.
    """
    invariants = 2 * (tf_pad * tf_pad + n_pad * n_pad) * in_bytes   # pessimistic 2x
    scratch = 4 * n_pad * tf_pad * 4                                # f32 temporaries
    max_bb = 1
    for bb in range(1, cap + 1):
        blocks = 2 * bb * n_pad * tf_pad * (in_bytes + out_bytes)   # double-buffered
        if invariants + scratch + blocks <= budget:
            max_bb = bb
    best_bb, best_key = 1, None
    for bb in range(1, min(max_bb, batch) + 1):
        steps = -(-batch // bb)
        key = (steps, steps * bb, -bb)
        if best_key is None or key < best_key:
            best_key, best_bb = key, bb
    return best_bb, -(-batch // best_bb) * best_bb


def _pick_node_tile(n_pad, batch_tiles):
    """Row-tile the node dim only when there is a single batch tile, so the grid
    always has >= 2 'parallel' steps (v7x megacore + software pipelining)."""
    if batch_tiles >= 2 or n_pad < 16:
        return n_pad
    for nt in range(n_pad // 2, 7, -1):
        if nt % 8 == 0 and n_pad % nt == 0:
            return nt
    return n_pad


def _spec(shape, index_map, single_buffered=False):
    if single_buffered:
        try:
            return pl.BlockSpec(shape, index_map, pipeline_mode=pl.Buffered(1))
        except TypeError:   # jax version without pipeline_mode on BlockSpec
            pass
    return pl.BlockSpec(shape, index_map)


# ---------------------------------------------------------------------------
# Parameter folding (tiny, plain JAX)
# ---------------------------------------------------------------------------
def _fold_params(adj, alpha, w, d, w2, d2, time, temporal_dim, feature_dim):
    """adj_scaled folds time*sigmoid(alpha)/2 into the adjacency rows; w_total fuses
    the feature operator, temporal operator, the -2x term and the Euler step:
        W_total = I + time*( kron(I_T, w_eff) + kron(w2_eff, I_F) - 2*I )."""
    alpha_sig = jax.nn.sigmoid(alpha).astype(jnp.float32)
    adj_scaled = (time * 0.5 * alpha_sig)[:, None] * adj.astype(jnp.float32)

    w_eff = ((w * jnp.clip(d, 0.0, 1.0)) @ w.T).astype(jnp.float32)
    w2_eff = ((w2 * jnp.clip(d2, 0.0, 1.0)) @ w2.T).astype(jnp.float32)
    tf = temporal_dim * feature_dim
    eye_tf = jnp.eye(tf, dtype=jnp.float32)
    w_total = eye_tf + time * (
        jnp.kron(jnp.eye(temporal_dim, dtype=jnp.float32), w_eff)
        + jnp.kron(w2_eff, jnp.eye(feature_dim, dtype=jnp.float32))
        - 2.0 * eye_tf)
    return adj_scaled, w_total


# ---------------------------------------------------------------------------
# Forward wrapper
# ---------------------------------------------------------------------------
def odeg_forward(x, adj, alpha, w, d, w2, d2, time, *, matmul_dtype=jnp.bfloat16):
    """x: (B, N, T, F) float32 -> relu(one explicit-Euler step of ODEFunc over [0,time]).

    MXU operands are fed in `matmul_dtype` (bf16 by default, f32 accumulation);
    pass matmul_dtype=jnp.float32 for bit-closer-to-torch numerics.
    """
    B, N, T, F = x.shape
    TF = T * F
    adj_scaled, w_total = _fold_params(adj, alpha, w, d, w2, d2, time, T, F)

    # Padding: lane dim to a multiple of 128 (unmasked vst / full MXU tiles), node
    # dim to a multiple of 8 (f32 sublanes; also keeps row-tiling legal). Padded
    # rows/cols are zero -> relu(0) = 0 -> sliced off.
    Np = _round_up(N, 8)
    TFp = _round_up(TF, 128)
    # NOTE: for very small graphs (N << 128) the adjacency matmul has a tiny
    # contraction dim; at production STGODE sizes (N >= 200) it is well-utilized.

    in_bytes = jnp.dtype(matmul_dtype).itemsize
    out_bytes = 4
    budget = _vmem_budget_bytes()
    Bb, Bp = _pick_batch_block(B, Np, TFp, in_bytes, out_bytes, budget)
    batch_tiles = Bp // Bb
    Nt = _pick_node_tile(Np, batch_tiles)
    node_tiles = Np // Nt

    x2d = x.reshape(B, N, TF).astype(jnp.float32)
    x2d = jnp.pad(x2d, ((0, Bp - B), (0, Np - N), (0, TFp - TF)))
    x_in = x2d.astype(matmul_dtype)
    adj_in = jnp.pad(adj_scaled, ((0, Np - N), (0, Np - N))).astype(matmul_dtype)
    w_in = jnp.pad(w_total, ((0, TFp - TF), (0, TFp - TF))).astype(matmul_dtype)

    cost = pl.CostEstimate(
        flops=2 * Bp * Np * TFp * (TFp + Np),
        bytes_accessed=(Bp * Np * TFp * (in_bytes + out_bytes)
                        + TFp * TFp * in_bytes + Np * Np * in_bytes),
        transcendentals=0,
    )

    def _call(single_buffer_invariants):
        sb = single_buffer_invariants
        x_full_spec = _spec((Bb, Np, TFp), lambda b, i: (b, 0, 0),
                            single_buffered=sb and batch_tiles == 1)
        adj_spec = _spec((Nt, Np), lambda b, i: (i, 0),
                         single_buffered=sb and node_tiles == 1)
        wtot_spec = _spec((TFp, TFp), lambda b, i: (0, 0), single_buffered=sb)
        out_spec = pl.BlockSpec((Bb, Nt, TFp), lambda b, i: (b, i, 0))

        if node_tiles == 1:
            kernel = _odeg_kernel_fullrows
            in_specs = [x_full_spec, adj_spec, wtot_spec]
            operands = (x_in, adj_in, w_in)
        else:
            kernel = _odeg_kernel_rowtiled
            xrows_spec = pl.BlockSpec((Bb, Nt, TFp), lambda b, i: (b, i, 0))
            in_specs = [x_full_spec, xrows_spec, adj_spec, wtot_spec]
            operands = (x_in, x_in, adj_in, w_in)

        return pl.pallas_call(
            kernel,
            out_shape=jax.ShapeDtypeStruct((Bp, Np, TFp), jnp.float32),
            grid_spec=pltpu.PrefetchScalarGridSpec(
                num_scalar_prefetch=0,
                grid=(batch_tiles, node_tiles),
                in_specs=in_specs,
                out_specs=out_spec,
            ),
            compiler_params=pltpu.CompilerParams(
                dimension_semantics=("parallel", "parallel"),
                vmem_limit_bytes=budget),
            cost_estimate=cost,
        )(*operands)

    try:
        out_padded = _call(True)
    except Exception:
        # pl.Buffered(1) single-buffering not supported on this jax/Mosaic version:
        # fall back to default double-buffering (identical results).
        out_padded = _call(False)

    return out_padded[:B, :N, :TF].reshape(B, N, T, F)


# ---------------------------------------------------------------------------
# Pure-JAX references
# ---------------------------------------------------------------------------
def odeg_reference(x, adj, alpha, w, d, w2, d2, time):
    """Float32 reference mirroring the PyTorch ODEFunc/ODEG line by line
    (single explicit-Euler step over [0, time])."""
    alpha_s = jax.nn.sigmoid(alpha)[None, :, None, None]
    xa = jnp.einsum('ij,kjlm->kilm', adj, x)
    w_eff = (w * jnp.clip(d, 0.0, 1.0)) @ w.T
    xw = jnp.einsum('ijkl,lm->ijkm', x, w_eff)
    w2_eff = (w2 * jnp.clip(d2, 0.0, 1.0)) @ w2.T
    xw2 = jnp.einsum('ijkl,km->ijml', x, w2_eff)
    x0 = x
    f = alpha_s / 2 * xa - x + xw - x + xw2 - x + x0
    z = x + time * f
    return jax.nn.relu(z)


if __name__ == "__main__":
    # Small shapes consistent with the module: batch, num_nodes, temporal_dim, feature_dim
    B, N, T, F = 2, 16, 8, 32
    TIME = 6.0

    key = jax.random.PRNGKey(0)
    kx, kadj, kw, kw2, kd, kd2 = jax.random.split(key, 6)

    x = jax.random.normal(kx, (B, N, T, F), dtype=jnp.float32)
    adj = jax.random.uniform(kadj, (N, N), dtype=jnp.float32)
    adj = (adj + adj.T) / (2.0 * N)   # symmetric-ish normalized adjacency surrogate

    alpha = 0.8 * jnp.ones((N,), dtype=jnp.float32)
    w = jnp.eye(F, dtype=jnp.float32) + 0.02 * jax.random.normal(kw, (F, F), dtype=jnp.float32)
    d = jnp.ones((F,), dtype=jnp.float32) - 0.1 * jax.random.uniform(kd, (F,), dtype=jnp.float32)
    w2 = jnp.eye(T, dtype=jnp.float32) + 0.02 * jax.random.normal(kw2, (T, T), dtype=jnp.float32)
    d2 = jnp.ones((T,), dtype=jnp.float32) - 0.1 * jax.random.uniform(kd2, (T,), dtype=jnp.float32)

    out = odeg_forward(x, adj, alpha, w, d, w2, d2, TIME)
    out = jax.block_until_ready(out)
    assert out.shape == (B, N, T, F)

    # 1) Matched-precision reference (bf16 operands, f32 accumulation): tight check of
    #    the Pallas plumbing (layout / tiling / operand folding).
    adj_s, w_tot = _fold_params(adj, alpha, w, d, w2, d2, TIME, T, F)
    xb = x.reshape(B, N, T * F).astype(jnp.bfloat16)
    z_match = (jnp.einsum('bnk,km->bnm', xb, w_tot.astype(jnp.bfloat16),
                          preferred_element_type=jnp.float32)
               + jnp.einsum('ij,bjk->bik', adj_s.astype(jnp.bfloat16), xb,
                            preferred_element_type=jnp.float32))
    ref_match = jnp.maximum(z_match, 0.0).reshape(B, N, T, F)
    err_match = float(jnp.max(jnp.abs(out - ref_match)))
    assert jnp.allclose(out, ref_match, atol=2e-3, rtol=2e-3), err_match

    # 2) Full-precision line-by-line reference: validates the fused algebra / module
    #    semantics (loose tolerance only because the MXU operands are bf16).
    ref = odeg_reference(x, adj, alpha, w, d, w2, d2, TIME)
    err = float(jnp.max(jnp.abs(out - ref)))
    assert jnp.allclose(out, ref, atol=5e-2, rtol=5e-2), err

    print("KERNEL_OK")
</pallas_src>

<mosaic_0001>
module attributes {stable_mosaic.version = 11 : i64} {
  func.func @_odeg_kernel_rowtiled(%arg0: i32, %arg1: i32, %arg2: memref<2x16x256xbf16, #tpu.memory_space<vmem>>, %arg3: memref<2x8x256xbf16, #tpu.memory_space<vmem>>, %arg4: memref<8x16xbf16, #tpu.memory_space<vmem>>, %arg5: memref<256x256xbf16, #tpu.memory_space<vmem>>, %arg6: memref<2x8x256xf32, #tpu.memory_space<vmem>>) attributes {dimension_semantics = [#tpu.dimension_semantics<parallel>, #tpu.dimension_semantics<parallel>], iteration_bounds = array<i64: 1, 2>, scalar_prefetch = 0 : i64, scratch_operands = 0 : i64, tpu.core_type = #tpu.core_type<tc>, window_params = [{pipeline_mode = #tpu.pipeline_mode<synchronous>, transform_indices = @transform_0, window_bounds = array<i64: 2, 16, 256>}, {transform_indices = @transform_1, window_bounds = array<i64: 2, 8, 256>}, {transform_indices = @transform_2, window_bounds = array<i64: 8, 16>}, {pipeline_mode = #tpu.pipeline_mode<synchronous>, transform_indices = @transform_3, window_bounds = array<i64: 256, 256>}, {transform_indices = @transform_4, window_bounds = array<i64: 2, 8, 256>}]} {
    %c0 = arith.constant 0 : index
    %c0_0 = arith.constant 0 : index
    %0 = vector.load %arg4[%c0, %c0_0] : memref<8x16xbf16, #tpu.memory_space<vmem>>, vector<8x16xbf16>
    %c0_1 = arith.constant 0 : index
    %c0_2 = arith.constant 0 : index
    %1 = vector.load %arg5[%c0_1, %c0_2] : memref<256x256xbf16, #tpu.memory_space<vmem>>, vector<256x256xbf16>
    %c0_i32 = arith.constant 0 : i32
    %2 = arith.index_cast %c0_i32 : i32 to index
    %c0_3 = arith.constant 0 : index
    %c0_4 = arith.constant 0 : index
    %3 = vector.load %arg3[%2, %c0_3, %c0_4] : memref<2x8x256xbf16, #tpu.memory_space<vmem>>, vector<1x8x256xbf16>
    %4 = vector.shape_cast %3 : vector<1x8x256xbf16> to vector<8x256xbf16>
    %cst = arith.constant dense<0.000000e+00> : vector<8x256xf32>
    %5 = tpu.matmul %4, %1, %cst {dimension_numbers = #tpu.dot_dimension_numbers<[1], [0], [0], [1], [0, 0, 1, 1], [], []>} : vector<8x256xbf16>, vector<256x256xbf16>, vector<8x256xf32> -> vector<8x256xf32>
    %6 = arith.index_cast %c0_i32 : i32 to index
    %c0_5 = arith.constant 0 : index
    %c0_6 = arith.constant 0 : index
    %7 = vector.load %arg2[%6, %c0_5, %c0_6] : memref<2x16x256xbf16, #tpu.memory_space<vmem>>, vector<1x16x256xbf16>
    %8 = vector.shape_cast %7 : vector<1x16x256xbf16> to vector<16x256xbf16>
    %cst_7 = arith.constant dense<0.000000e+00> : vector<8x256xf32>
    %9 = tpu.matmul %0, %8, %cst_7 {dimension_numbers = #tpu.dot_dimension_numbers<[1], [0], [0], [1], [0, 0, 1, 1], [], []>} : vector<8x16xbf16>, vector<16x256xbf16>, vector<8x256xf32> -> vector<8x256xf32>
    %10 = arith.addf %5, %9 : vector<8x256xf32>
    %cst_8 = arith.constant 0.000000e+00 : f32
    %11 = vector.broadcast %cst_8 : f32 to vector<8x256xf32>
    %12 = arith.maximumf %10, %11 : vector<8x256xf32>
    %13 = arith.index_cast %c0_i32 : i32 to index
    %c0_9 = arith.constant 0 : index
    %c0_10 = arith.constant 0 : index
    %14 = vector.load %arg6[%13, %c0_9, %c0_10] : memref<2x8x256xf32, #tpu.memory_space<vmem>>, vector<1x8x256xf32>
    %15 = vector.shape_cast %14 : vector<1x8x256xf32> to vector<8x256xf32>
    %16 = vector.shape_cast %12 : vector<8x256xf32> to vector<1x8x256xf32>
    tpu.vector_store %arg6[%13, %c0_9, %c0_10], %16 {strides = array<i32>} : memref<2x8x256xf32, #tpu.memory_space<vmem>>, vector<1x8x256xf32>,
    %c1_i32 = arith.constant 1 : i32
    %17 = arith.index_cast %c1_i32 : i32 to index
    %c0_11 = arith.constant 0 : index
    %c0_12 = arith.constant 0 : index
    %18 = vector.load %arg3[%17, %c0_11, %c0_12] : memref<2x8x256xbf16, #tpu.memory_space<vmem>>, vector<1x8x256xbf16>
    %19 = vector.shape_cast %18 : vector<1x8x256xbf16> to vector<8x256xbf16>
    %cst_13 = arith.constant dense<0.000000e+00> : vector<8x256xf32>
    %20 = tpu.matmul %19, %1, %cst_13 {dimension_numbers = #tpu.dot_dimension_numbers<[1], [0], [0], [1], [0, 0, 1, 1], [], []>} : vector<8x256xbf16>, vector<256x256xbf16>, vector<8x256xf32> -> vector<8x256xf32>
    %21 = arith.index_cast %c1_i32 : i32 to index
    %c0_14 = arith.constant 0 : index
    %c0_15 = arith.constant 0 : index
    %22 = vector.load %arg2[%21, %c0_14, %c0_15] : memref<2x16x256xbf16, #tpu.memory_space<vmem>>, vector<1x16x256xbf16>
    %23 = vector.shape_cast %22 : vector<1x16x256xbf16> to vector<16x256xbf16>
    %cst_16 = arith.constant dense<0.000000e+00> : vector<8x256xf32>
    %24 = tpu.matmul %0, %23, %cst_16 {dimension_numbers = #tpu.dot_dimension_numbers<[1], [0], [0], [1], [0, 0, 1, 1], [], []>} : vector<8x16xbf16>, vector<16x256xbf16>, vector<8x256xf32> -> vector<8x256xf32>
    %25 = arith.addf %20, %24 : vector<8x256xf32>
    %cst_17 = arith.constant 0.000000e+00 : f32
    %26 = vector.broadcast %cst_17 : f32 to vector<8x256xf32>
    %27 = arith.maximumf %25, %26 : vector<8x256xf32>
    %28 = arith.index_cast %c1_i32 : i32 to index
    %c0_18 = arith.constant 0 : index
    %c0_19 = arith.constant 0 : index
    %29 = vector.load %arg6[%28, %c0_18, %c0_19] : memref<2x8x256xf32, #tpu.memory_space<vmem>>, vector<1x8x256xf32>
    %30 = vector.shape_cast %29 : vector<1x8x256xf32> to vector<8x256xf32>
    %31 = vector.shape_cast %27 : vector<8x256xf32> to vector<1x8x256xf32>
    tpu.vector_store %arg6[%28, %c0_18, %c0_19], %31 {strides = array<i32>} : memref<2x8x256xf32, #tpu.memory_space<vmem>>, vector<1x8x256xf32>,
    %c2_i32 = arith.constant 2 : i32
    return
  }
  func.func @transform_0(%arg0: i32, %arg1: i32) -> (i32, i32, i32) {
    %c0_i32 = arith.constant 0 : i32
    %c0_i32_0 = arith.constant 0 : i32
    %c0_i32_1 = arith.constant 0 : i32
    return %arg0, %c0_i32, %c0_i32_0 : i32, i32, i32
  }
  func.func @transform_1(%arg0: i32, %arg1: i32) -> (i32, i32, i32) {
    %c0_i32 = arith.constant 0 : i32
    %c0_i32_0 = arith.constant 0 : i32
    return %arg0, %arg1, %c0_i32 : i32, i32, i32
  }
  func.func @transform_2(%arg0: i32, %arg1: i32) -> (i32, i32) {
    %c0_i32 = arith.constant 0 : i32
    %c0_i32_0 = arith.constant 0 : i32
    return %arg1, %c0_i32 : i32, i32
  }
  func.func @transform_3(%arg0: i32, %arg1: i32) -> (i32, i32) {
    %c0_i32 = arith.constant 0 : i32
    %c0_i32_0 = arith.constant 0 : i32
    %c0_i32_1 = arith.constant 0 : i32
    return %c0_i32, %c0_i32_0 : i32, i32
  }
  func.func @transform_4(%arg0: i32, %arg1: i32) -> (i32, i32, i32) {
    %c0_i32 = arith.constant 0 : i32
    %c0_i32_0 = arith.constant 0 : i32
    return %arg0, %arg1, %c0_i32 : i32, i32, i32
  }
}

module attributes {stable_mosaic.version = 11 : i64} {
  func.func @_odeg_kernel_rowtiled(%arg0: i32, %arg1: i32, %arg2: memref<2x16x256xbf16, #tpu.memory_space<vmem>>, %arg3: memref<2x8x256xbf16, #tpu.memory_space<vmem>>, %arg4: memref<8x16xbf16, #tpu.memory_space<vmem>>, %arg5: memref<256x256xbf16, #tpu.memory_space<vmem>>, %arg6: memref<2x8x256xf32, #tpu.memory_space<vmem>>) attributes {dimension_semantics = [#tpu.dimension_semantics<parallel>, #tpu.dimension_semantics<parallel>], iteration_bounds = array<i64: 1, 2>, scalar_prefetch = 0 : i64, scratch_operands = 0 : i64, tpu.core_type = #tpu.core_type<tc>, window_params = [{transform_indices = @transform_0, window_bounds = array<i64: 2, 16, 256>}, {transform_indices = @transform_1, window_bounds = array<i64: 2, 8, 256>}, {transform_indices = @transform_2, window_bounds = array<i64: 8, 16>}, {pipeline_mode = #tpu.pipeline_mode<synchronous>, transform_indices = @transform_3, window_bounds = array<i64: 256, 256>}, {transform_indices = @transform_4, window_bounds = array<i64: 2, 8, 256>}]} {
    %c0 = arith.constant 0 : index
    %c0_0 = arith.constant 0 : index
    %0 = vector.load %arg4[%c0, %c0_0] : memref<8x16xbf16, #tpu.memory_space<vmem>>, vector<8x16xbf16>
    %c0_1 = arith.constant 0 : index
    %c0_2 = arith.constant 0 : index
    %1 = vector.load %arg5[%c0_1, %c0_2] : memref<256x256xbf16, #tpu.memory_space<vmem>>, vector<256x256xbf16>
    %c0_i32 = arith.constant 0 : i32
    %2 = arith.index_cast %c0_i32 : i32 to index
    %c0_3 = arith.constant 0 : index
    %c0_4 = arith.constant 0 : index
    %3 = vector.load %arg3[%2, %c0_3, %c0_4] : memref<2x8x256xbf16, #tpu.memory_space<vmem>>, vector<1x8x256xbf16>
    %4 = vector.shape_cast %3 : vector<1x8x256xbf16> to vector<8x256xbf16>
    %cst = arith.constant dense<0.000000e+00> : vector<8x256xf32>
    %5 = tpu.matmul %4, %1, %cst {dimension_numbers = #tpu.dot_dimension_numbers<[1], [0], [0], [1], [0, 0, 1, 1], [], []>} : vector<8x256xbf16>, vector<256x256xbf16>, vector<8x256xf32> -> vector<8x256xf32>
    %6 = arith.index_cast %c0_i32 : i32 to index
    %c0_5 = arith.constant 0 : index
    %c0_6 = arith.constant 0 : index
    %7 = vector.load %arg2[%6, %c0_5, %c0_6] : memref<2x16x256xbf16, #tpu.memory_space<vmem>>, vector<1x16x256xbf16>
    %8 = vector.shape_cast %7 : vector<1x16x256xbf16> to vector<16x256xbf16>
    %cst_7 = arith.constant dense<0.000000e+00> : vector<8x256xf32>
    %9 = tpu.matmul %0, %8, %cst_7 {dimension_numbers = #tpu.dot_dimension_numbers<[1], [0], [0], [1], [0, 0, 1, 1], [], []>} : vector<8x16xbf16>, vector<16x256xbf16>, vector<8x256xf32> -> vector<8x256xf32>
    %10 = arith.addf %5, %9 : vector<8x256xf32>
    %cst_8 = arith.constant 0.000000e+00 : f32
    %11 = vector.broadcast %cst_8 : f32 to vector<8x256xf32>
    %12 = arith.maximumf %10, %11 : vector<8x256xf32>
    %13 = arith.index_cast %c0_i32 : i32 to index
    %c0_9 = arith.constant 0 : index
    %c0_10 = arith.constant 0 : index
    %14 = vector.load %arg6[%13, %c0_9, %c0_10] : memref<2x8x256xf32, #tpu.memory_space<vmem>>, vector<1x8x256xf32>
    %15 = vector.shape_cast %14 : vector<1x8x256xf32> to vector<8x256xf32>
    %16 = vector.shape_cast %12 : vector<8x256xf32> to vector<1x8x256xf32>
    tpu.vector_store %arg6[%13, %c0_9, %c0_10], %16 {strides = array<i32>} : memref<2x8x256xf32, #tpu.memory_space<vmem>>, vector<1x8x256xf32>,
    %c1_i32 = arith.constant 1 : i32
    %17 = arith.index_cast %c1_i32 : i32 to index
    %c0_11 = arith.constant 0 : index
    %c0_12 = arith.constant 0 : index
    %18 = vector.load %arg3[%17, %c0_11, %c0_12] : memref<2x8x256xbf16, #tpu.memory_space<vmem>>, vector<1x8x256xbf16>
    %19 = vector.shape_cast %18 : vector<1x8x256xbf16> to vector<8x256xbf16>
    %cst_13 = arith.constant dense<0.000000e+00> : vector<8x256xf32>
    %20 = tpu.matmul %19, %1, %cst_13 {dimension_numbers = #tpu.dot_dimension_numbers<[1], [0], [0], [1], [0, 0, 1, 1], [], []>} : vector<8x256xbf16>, vector<256x256xbf16>, vector<8x256xf32> -> vector<8x256xf32>
    %21 = arith.index_cast %c1_i32 : i32 to index
    %c0_14 = arith.constant 0 : index
    %c0_15 = arith.constant 0 : index
    %22 = vector.load %arg2[%21, %c0_14, %c0_15] : memref<2x16x256xbf16, #tpu.memory_space<vmem>>, vector<1x16x256xbf16>
    %23 = vector.shape_cast %22 : vector<1x16x256xbf16> to vector<16x256xbf16>
    %cst_16 = arith.constant dense<0.000000e+00> : vector<8x256xf32>
    %24 = tpu.matmul %0, %23, %cst_16 {dimension_numbers = #tpu.dot_dimension_numbers<[1], [0], [0], [1], [0, 0, 1, 1], [], []>} : vector<8x16xbf16>, vector<16x256xbf16>, vector<8x256xf32> -> vector<8x256xf32>
    %25 = arith.addf %20, %24 : vector<8x256xf32>
    %cst_17 = arith.constant 0.000000e+00 : f32
    %26 = vector.broadcast %cst_17 : f32 to vector<8x256xf32>
    %27 = arith.maximumf %25, %26 : vector<8x256xf32>
    %28 = arith.index_cast %c1_i32 : i32 to index
    %c0_18 = arith.constant 0 : index
    %c0_19 = arith.constant 0 : index
    %29 = vector.load %arg6[%28, %c0_18, %c0_19] : memref<2x8x256xf32, #tpu.memory_space<vmem>>, vector<1x8x256xf32>
    %30 = vector.shape_cast %29 : vector<1x8x256xf32> to vector<8x256xf32>
    %31 = vector.shape_cast %27 : vector<8x256xf32> to vector<1x8x256xf32>
    tpu.vector_store %arg6[%28, %c0_18, %c0_19], %31 {strides = array<i32>} : memref<2x8x256xf32, #tpu.memory_space<vmem>>, vector<1x8x256xf32>,
    %c2_i32 = arith.constant 2 : i32
    return
  }
  func.func @transform_0(%arg0: i32, %arg1: i32) -> (i32, i32, i32) {
    %c0_i32 = arith.constant 0 : i32
    %c0_i32_0 = arith.constant 0 : i32
    %c0_i32_1 = arith.constant 0 : i32
    return %arg0, %c0_i32, %c0_i32_0 : i32, i32, i32
  }
  func.func @transform_1(%arg0: i32, %arg1: i32) -> (i32, i32, i32) {
    %c0_i32 = arith.constant 0 : i32
    %c0_i32_0 = arith.constant 0 : i32
    return %arg0, %arg1, %c0_i32 : i32, i32, i32
  }
  func.func @transform_2(%arg0: i32, %arg1: i32) -> (i32, i32) {
    %c0_i32 = arith.constant 0 : i32
    %c0_i32_0 = arith.constant 0 : i32
    return %arg1, %c0_i32 : i32, i32
  }
  func.func @transform_3(%arg0: i32, %arg1: i32) -> (i32, i32) {
    %c0_i32 = arith.constant 0 : i32
    %c0_i32_0 = arith.constant 0 : i32
    %c0_i32_1 = arith.constant 0 : i32
    return %c0_i32, %c0_i32_0 : i32, i32
  }
  func.func @transform_4(%arg0: i32, %arg1: i32) -> (i32, i32, i32) {
    %c0_i32 = arith.constant 0 : i32
    %c0_i32_0 = arith.constant 0 : i32
    return %arg0, %arg1, %c0_i32 : i32, i32, i32
  }
}

</mosaic_0001>

<llo_original>
// kernel: tpu_custom_call.1
$region0: #{tpu_custom_call.1}
  #allocation0 [shape = 'u32[]', space=smem, size = 0x4, offset = 0x4, fixed_abs, tag = 'smem constant byte address 0x4 - core index']
  #allocation1 [shape = 'u32[144,128]{1,0:T(1,128)}', space=vmem, size = 0x12000, scoped, tag = 'internal scratch']
  %s0 = inlined_call_operand.hbm [shape: bf16[2,16,256], index: 0, kind: input, shape index: {}]
  %s1 = inlined_call_operand.hbm [shape: bf16[2,16,256], index: 1, kind: input, shape index: {}]
  %s2 = inlined_call_operand.hbm [shape: bf16[16,16], index: 2, kind: input, shape index: {}]
  %s3 = inlined_call_operand.hbm [shape: bf16[256,256], index: 3, kind: input, shape index: {}]
  %s4 = inlined_call_operand.hbm [shape: f32[2,16,256], index: 4, kind: output, shape index: {}]
  %s5 = sld [smem:[#allocation0]]
  $region65: #{tpu_custom_call.1} parent=0
    _
  %s7 = ssub.s32 1, %s5
  %s8 = scalar_select 0, %s7, %s5
  $region1: #{tpu_custom_call.1} parent=0
    #allocation2 [shape = 'u8[16384]{0}', space=vmem, size = 0x4000, scoped, tag = 'input window, operand 0, single buffered']
    #allocation3 [shape = 's32[2]{0}', space=sflag, size = 0x8, scoped, tag = 'scoped memory for tpu_custom_call.1']
    #allocation4 [shape = 's32[2]{0}', space=sflag, size = 0x8, scoped, tag = 'scoped memory for tpu_custom_call.1']
    #allocation5 [shape = 'u8[16384]{0}', space=vmem, size = 0x4000, scoped, tag = 'input window, operand 1']
    #allocation6 [shape = 's32[2]{0}', space=sflag, size = 0x8, scoped, tag = 'scoped memory for tpu_custom_call.1']
    #allocation7 [shape = 'u8[4096]{0}', space=vmem, size = 0x1000, scoped, tag = 'input window, operand 2']
    #allocation8 [shape = 'u8[131072]{0}', space=vmem, size = 0x20000, scoped, tag = 'input window, operand 3, single buffered']
    #allocation9 [shape = 's32[1]{0}', space=sflag, size = 0x4, scoped, tag = 'scoped memory for tpu_custom_call.1']
    #allocation10 [shape = 'u8[32768]{0}', space=vmem, size = 0x8000, scoped, tag = 'output window, operand 0']
    %9 = vsyncpa [#allocation3], 0
    %10 = vsyncpa [#allocation6], 0
    %s11 = scalar_lea.sflag [#allocation6], 1
    %12 = vsyncpa %s11, 0
    %13 = vsyncpa [#allocation9], 0
    %14 = vsyncpa [#allocation4], 0
    %s15 = scalar_lea.sflag [#allocation4], 1
    %16 = vsyncpa %s15, 0
    loop: start=0, step=1, limit=4
    $region2: #{tpu_custom_call.1} parent=1 // loop_pre_header
      _
    $region3: #{tpu_custom_call.1} parent=1 // loop_header
      %s18 = sphi 0, %s22
      %p19 = scmp.ge.s32.totalorder %s18, 4
      %s25 = sphi 0, %s37
      %s26 = sphi 0, %s33
      %s27 = sphi 0, %s25
      %s28 = sphi 0, %s26
      %s29 = sphi 0, %s27
      %s30 = sphi 0, %s28
      %s40 = sphi 0, %s42
      %s43 = sphi 0, %s40
      %s44 = sphi 0, %s43
      %s60 = sphi 0, %s44
      %s68 = sphi 0, %s70
      %s71 = sphi 0, %s68
      %s72 = sphi 0, %s71
      %s88 = sphi 0, %s72
      %s94 = sphi 0, %s96
      %s97 = sphi 0, %s94
      %s98 = sphi 0, %s97
      %s114 = sphi 0, %s98
      %s118 = sphi 0, %s118
      %s120 = sphi 0, %s118
      %s121 = sphi 0, %s120
      %s135 = sphi 0, %s121
      %s143 = sphi 0, %s145
      %s146 = sphi 0, %s143
      %s147 = sphi 0, %s146
      %s163 = sphi 0, %s147
    $region4: #{tpu_custom_call.1} parent=1 // loop_header_branch
      %21 = sbr.rel (%p19) target = $region8
    $region5: #{tpu_custom_call.1} parent=1 // loop_body
      %s23 = ssub.s32 %s18, 1
      %s24 = ssub.s32 %s18, 2
      %s31 = sadd.s32 1, %s26
      %p32 = scmp.ge.s32.totalorder %s31, 2
      %s33 = scalar_select %p32, 0, %s31
      %s34 = sadd.s32 1, %s25
      %s35 = scalar_select %p32, %s34, %s25
      %p36 = scmp.ge.s32.totalorder %s35, 1
      %s37 = scalar_select %p36, 0, %s35
      %s38 = ssub.s32 %s25, %s37
      %p39 = scmp.eq.s32.totalorder %s38, 0
      %s41 = sadd.s32 %s40, 1
      %s42 = scalar_select %p39, %s40, %s41
      %p45 = pneg %p39
      %p46 = scmp.eq.s32.totalorder %s18, 1
      %p47 = por %p45, %p46
      %p48 = scmp.ne.s32.totalorder %s40, %s43
      %p49 = scmp.eq.s32.totalorder %s18, 0
      %p50 = por %p48, %p49
      %p51 = scmp.ne.s32.totalorder %s40, %s43
      %p52 = scmp.eq.s32.totalorder %s23, 1
      %p53 = por %p51, %p52
      %p54 = scmp.ne.s32.totalorder %s43, %s44
      %p55 = scmp.eq.s32.totalorder %s23, 0
      %p56 = por %p54, %p55
      %p57 = scmp.ne.s32.totalorder %s43, %s44
      %p58 = scmp.eq.s32.totalorder %s24, 1
      %p59 = por %p57, %p58
      %p61 = scmp.ne.s32.totalorder %s44, %s60
      %p62 = scmp.eq.s32.totalorder %s24, 0
      %p63 = por %p61, %p62
      %s64 = ssub.s32 %s25, %s37
      %s65 = ssub.s32 %s26, %s33
      %s66 = sor.u32 %s64, %s65
      %p67 = scmp.eq.s32.totalorder %s66, 0
      %s69 = sadd.s32 %s68, 1
      %s70 = scalar_select %p67, %s68, %s69
      %p73 = pneg %p67
      %p74 = scmp.eq.s32.totalorder %s18, 1
      %p75 = por %p73, %p74
      %p76 = scmp.ne.s32.totalorder %s68, %s71
      %p77 = scmp.eq.s32.totalorder %s18, 0
      %p78 = por %p76, %p77
      %p79 = scmp.ne.s32.totalorder %s68, %s71
      %p80 = scmp.eq.s32.totalorder %s23, 1
      %p81 = por %p79, %p80
      %p82 = scmp.ne.s32.totalorder %s71, %s72
      %p83 = scmp.eq.s32.totalorder %s23, 0
      %p84 = por %p82, %p83
      %p85 = scmp.ne.s32.totalorder %s71, %s72
      %p86 = scmp.eq.s32.totalorder %s24, 1
      %p87 = por %p85, %p86
      %p89 = scmp.ne.s32.totalorder %s72, %s88
      %p90 = scmp.eq.s32.totalorder %s24, 0
      %p91 = por %p89, %p90
      %s92 = ssub.s32 %s26, %s33
      %p93 = scmp.eq.s32.totalorder %s92, 0
      %s95 = sadd.s32 %s94, 1
      %s96 = scalar_select %p93, %s94, %s95
      %p99 = pneg %p93
      %p100 = scmp.eq.s32.totalorder %s18, 1
      %p101 = por %p99, %p100
      %p102 = scmp.ne.s32.totalorder %s94, %s97
      %p103 = scmp.eq.s32.totalorder %s18, 0
      %p104 = por %p102, %p103
      %p105 = scmp.ne.s32.totalorder %s94, %s97
      %p106 = scmp.eq.s32.totalorder %s23, 1
      %p107 = por %p105, %p106
      %p108 = scmp.ne.s32.totalorder %s97, %s98
      %p109 = scmp.eq.s32.totalorder %s23, 0
      %p110 = por %p108, %p109
      %p111 = scmp.ne.s32.totalorder %s97, %s98
      %p112 = scmp.eq.s32.totalorder %s24, 1
      %p113 = por %p111, %p112
      %p115 = scmp.ne.s32.totalorder %s98, %s114
      %p116 = scmp.eq.s32.totalorder %s24, 0
      %p117 = por %p115, %p116
      %s119 = sadd.s32 %s118, 1
      %p122 = scmp.eq.s32.totalorder %s18, 1
      %p123 = scmp.ne.s32.totalorder %s118, %s120
      %p124 = scmp.eq.s32.totalorder %s18, 0
      %p125 = por %p123, %p124
      %p126 = scmp.ne.s32.totalorder %s118, %s120
      %p127 = scmp.eq.s32.totalorder %s23, 1
      %p128 = por %p126, %p127
      %p129 = scmp.ne.s32.totalorder %s120, %s121
      %p130 = scmp.eq.s32.totalorder %s23, 0
      %p131 = por %p129, %p130
      %p132 = scmp.ne.s32.totalorder %s120, %s121
      %p133 = scmp.eq.s32.totalorder %s24, 1
      %p134 = por %p132, %p133
      %p136 = scmp.ne.s32.totalorder %s121, %s135
      %p137 = scmp.eq.s32.totalorder %s24, 0
      %p138 = por %p136, %p137
      %s139 = ssub.s32 %s25, %s37
      %s140 = ssub.s32 %s26, %s33
      %s141 = sor.u32 %s139, %s140
      %p142 = scmp.eq.s32.totalorder %s141, 0
      %s144 = sadd.s32 %s143, 1
      %s145 = scalar_select %p142, %s143, %s144
      %p148 = pneg %p142
      %p149 = scmp.eq.s32.totalorder %s18, 1
      %p150 = por %p148, %p149
      %p151 = scmp.ne.s32.totalorder %s143, %s146
      %p152 = scmp.eq.s32.totalorder %s18, 0
      %p153 = por %p151, %p152
      %p154 = scmp.ne.s32.totalorder %s143, %s146
      %p155 = scmp.eq.s32.totalorder %s23, 1
      %p156 = por %p154, %p155
      %p157 = scmp.ne.s32.totalorder %s146, %s147
      %p158 = scmp.eq.s32.totalorder %s23, 0
      %p159 = por %p157, %p158
      %p160 = scmp.ne.s32.totalorder %s146, %s147
      %p161 = scmp.eq.s32.totalorder %s24, 1
      %p162 = por %p160, %p161
      %p164 = scmp.ne.s32.totalorder %s147, %s163
      %p165 = scmp.eq.s32.totalorder %s24, 0
      %p166 = por %p164, %p165
      %p167 = scmp.le.s32.totalorder 1, %s18
      %p168 = scmp.lt.s32.totalorder %s18, 3
      %p169 = pnand %p167, %p168
      %p170 = pneg %p169
      // Predicated region
      $region9: #{tpu_custom_call.1} parent=5 // pred_check
        _
      $region10: #{tpu_custom_call.1} parent=5 // pred_check_branch
        %172 = sbr.rel (%p169) target = $region12
      $region11: #{tpu_custom_call.1} parent=5 // pred_region
        %s173 = ssub.s32 %s18, 1
        // Predicated region
        $region13: #{tpu_custom_call.1} parent=11 // pred_check
          %p174 = pneg %p56
        $region14: #{tpu_custom_call.1} parent=11 // pred_check_branch
          %176 = sbr.rel (%p174) target = $region16
        $region15: #{tpu_custom_call.1} parent=11 // pred_region
          %s177 = smul.u32 2, %s27
          %s179 = ssub.s32 512, 512
          %180 = vsyncadd [#allocation3], %s179
          %s181 = smul.addr %s177, 4
          %s182 = smul.addr %s181, 64
          %s183 = scalar_lea.hbm %s0, %s182
          %s184 = sshll.u32 [#allocation2], 4
          %s185 = int_to_ptr.vmem [resolvable:$true] %s184
          %190 = dma.hbm_to_vmem [thread:$0]  %s183, 512, %s185, [#allocation3], 128, 128, 8
        $region16: #{tpu_custom_call.1} parent=11 // pred_fallthru
          _
        // Predicated region
        $region17: #{tpu_custom_call.1} parent=11 // pred_check
          %p191 = pneg %p131
        $region18: #{tpu_custom_call.1} parent=11 // pred_check_branch
          %193 = sbr.rel (%p191) target = $region20
        $region19: #{tpu_custom_call.1} parent=11 // pred_region
          %s195 = ssub.s32 4096, 4096
          %196 = vsyncadd [#allocation9], %s195
          %s197 = sshll.u32 [#allocation8], 4
          %s198 = int_to_ptr.vmem [resolvable:$true] %s197
          %203 = dma.hbm_to_vmem [thread:$0]  %s3, 4096, %s198, [#allocation9], 128, 128, 8
        $region20: #{tpu_custom_call.1} parent=11 // pred_fallthru
          _
      $region12: #{tpu_custom_call.1} parent=5 // pred_fallthru
        _
      %p204 = scmp.lt.s32.totalorder %s18, 2
      // Predicated region
      $region21: #{tpu_custom_call.1} parent=5 // pred_check
        %p205 = pneg %p204
      $region22: #{tpu_custom_call.1} parent=5 // pred_check_branch
        %207 = sbr.rel (%p205) target = $region24
      $region23: #{tpu_custom_call.1} parent=5 // pred_region
        // Predicated region
        $region25: #{tpu_custom_call.1} parent=23 // pred_check
          %p208 = pneg %p78
        $region26: #{tpu_custom_call.1} parent=23 // pred_check_branch
          %210 = sbr.rel (%p208) target = $region28
        $region27: #{tpu_custom_call.1} parent=23 // pred_region
          %s211 = sand.u32 %s18, 1
          %s212 = scalar_lea.sflag [#allocation6], %s211
          %s213 = sand.u32 %s68, 1
          %s214 = smul.addr %s213, 16
          %s215 = scalar_lea.vmem [#allocation5], %s214
          %s216 = smul.u32 2, %s25
          %s218 = ssub.s32 256, 256
          %219 = vsyncadd %s212, %s218
          %s220 = smul.addr %s26, 2
          %s221 = smul.addr %s216, 4
          %s222 = sadd.s32 %s220, %s221
          %s223 = smul.addr %s222, 64
          %s224 = scalar_lea.hbm %s1, %s223
          %s225 = sshll.u32 %s215, 4
          %s226 = int_to_ptr.vmem [resolvable:$true] %s225
          %231 = dma.hbm_to_vmem [thread:$0]  %s224, 256, %s226, %s212, 256, 128, 8
        $region28: #{tpu_custom_call.1} parent=23 // pred_fallthru
          _
        // Predicated region
        $region29: #{tpu_custom_call.1} parent=23 // pred_check
          %p232 = pneg %p104
        $region30: #{tpu_custom_call.1} parent=23 // pred_check_branch
          %234 = sbr.rel (%p232) target = $region32
        $region31: #{tpu_custom_call.1} parent=23 // pred_region
          %s235 = sand.u32 %s18, 1
          %s236 = scalar_lea.sflag [#allocation6], %s235
          %s237 = sand.u32 %s94, 1
          %s238 = smul.addr %s237, 4
          %s239 = scalar_lea.vmem [#allocation7], %s238
          %s241 = ssub.s32 64, 64
          %242 = vsyncadd %s236, %s241
          %s243 = smul.addr %s26, 64
          %s244 = scalar_lea.hbm %s2, %s243
          %s246 = sshll.u32 %s239, 4
          %s247 = int_to_ptr.vmem [resolvable:$true] %s246
          %249 = dma.hbm_to_vmem [thread:$0]  %s244, 64, %s247, %s236
        $region32: #{tpu_custom_call.1} parent=23 // pred_fallthru
          _
      $region24: #{tpu_custom_call.1} parent=5 // pred_fallthru
        _
      %p250 = scmp.le.s32.totalorder 1, %s18
      %p251 = scmp.lt.s32.totalorder %s18, 3
      %p252 = pnand %p250, %p251
      %p253 = pneg %p252
      // Predicated region
      $region33: #{tpu_custom_call.1} parent=5 // pred_check
        _
      $region34: #{tpu_custom_call.1} parent=5 // pred_check_branch
        %255 = sbr.rel (%p252) target = $region36
      $region35: #{tpu_custom_call.1} parent=5 // pred_region
        %s256 = ssub.s32 %s18, 1
        // Predicated region
        $region37: #{tpu_custom_call.1} parent=35 // pred_check
          %p257 = pneg %p56
        $region38: #{tpu_custom_call.1} parent=35 // pred_check_branch
          %259 = sbr.rel (%p257) target = $region40
        $region39: #{tpu_custom_call.1} parent=35 // pred_region
          %260 = dma.done [#allocation3], 512
        $region40: #{tpu_custom_call.1} parent=35 // pred_fallthru
          _
        %s261 = sand.u32 %s23, 1
        %s262 = scalar_lea.sflag [#allocation6], %s261
        %s263 = sand.u32 %s71, 1
        %s264 = smul.addr %s263, 16
        %s265 = scalar_lea.vmem [#allocation5], %s264
        // Predicated region
        $region41: #{tpu_custom_call.1} parent=35 // pred_check
          %p266 = pneg %p84
        $region42: #{tpu_custom_call.1} parent=35 // pred_check_branch
          %268 = sbr.rel (%p266) target = $region44
        $region43: #{tpu_custom_call.1} parent=35 // pred_region
          %269 = dma.done %s262, 256
        $region44: #{tpu_custom_call.1} parent=35 // pred_fallthru
          _
        %s270 = sand.u32 %s23, 1
        %s271 = scalar_lea.sflag [#allocation6], %s270
        %s272 = sand.u32 %s97, 1
        %s273 = smul.addr %s272, 4
        %s274 = scalar_lea.vmem [#allocation7], %s273
        // Predicated region
        $region45: #{tpu_custom_call.1} parent=35 // pred_check
          %p275 = pneg %p110
        $region46: #{tpu_custom_call.1} parent=35 // pred_check_branch
          %277 = sbr.rel (%p275) target = $region48
        $region47: #{tpu_custom_call.1} parent=35 // pred_region
          %278 = dma.done %s271, 64
        $region48: #{tpu_custom_call.1} parent=35 // pred_fallthru
          _
        // Predicated region
        $region49: #{tpu_custom_call.1} parent=35 // pred_check
          %p279 = pneg %p131
        $region50: #{tpu_custom_call.1} parent=35 // pred_check_branch
          %281 = sbr.rel (%p279) target = $region52
        $region51: #{tpu_custom_call.1} parent=35 // pred_region
          %282 = dma.done [#allocation9], 4096
        $region52: #{tpu_custom_call.1} parent=35 // pred_fallthru
          _
        %p283 = pneg %p56
        %p284 = pneg %p53
        %s285 = sand.u32 %s23, 1
        %s286 = scalar_lea.sflag [#allocation6], %s285
        %s287 = sand.u32 %s71, 1
        %s288 = smul.addr %s287, 16
        %s289 = scalar_lea.vmem [#allocation5], %s288
        %p290 = pneg %p84
        %p291 = pneg %p81
        %s292 = sand.u32 %s23, 1
        %s293 = scalar_lea.sflag [#allocation6], %s292
        %s294 = sand.u32 %s97, 1
        %s295 = smul.addr %s294, 4
        %s296 = scalar_lea.vmem [#allocation7], %s295
        %p297 = pneg %p110
        %p298 = pneg %p107
        %p299 = pneg %p131
        %p300 = pneg %p128
        %p301 = pneg %p159
        %p302 = pneg %p156
        %s303 = sand.u32 %s146, 1
        %s304 = scalar_lea.sflag [#allocation4], %s303
        %s305 = sand.u32 %s146, 1
        %s306 = smul.addr %s305, 32
        %s307 = scalar_lea.vmem [#allocation10], %s306
        %s308 = smul.u32 2, %s27
        %s309 = smul.u32 2, %s27
        %s310 = smul.u32 2, %s27
        %v312 = vld [vmem:[%s274] sm:$0xf]
        %v313 = vld [vmem:[#allocation8] sm:$0xff]
        %v314 = vld [vmem:[#allocation8 + $0x8] sm:$0xff]
        %v315 = vld [vmem:[#allocation8 + $0x10] sm:$0xff]
        %v316 = vld [vmem:[#allocation8 + $0x18] sm:$0xff]
        %v317 = vld [vmem:[#allocation8 + $0x20] sm:$0xff]
        %v318 = vld [vmem:[#allocation8 + $0x28] sm:$0xff]
        %v319 = vld [vmem:[#allocation8 + $0x30] sm:$0xff]
        %v320 = vld [vmem:[#allocation8 + $0x38] sm:$0xff]
        %v321 = vld [vmem:[#allocation8 + $0x40] sm:$0xff]
        %v322 = vld [vmem:[#allocation8 + $0x48] sm:$0xff]
        %v323 = vld [vmem:[#allocation8 + $0x50] sm:$0xff]
        %v324 = vld [vmem:[#allocation8 + $0x58] sm:$0xff]
        %v325 = vld [vmem:[#allocation8 + $0x60] sm:$0xff]
        %v326 = vld [vmem:[#allocation8 + $0x68] sm:$0xff]
        %v327 = vld [vmem:[#allocation8 + $0x70] sm:$0xff]
        %v328 = vld [vmem:[#allocation8 + $0x78] sm:$0xff]
        %v329 = vld [vmem:[#allocation8 + $0x80] sm:$0xff]
        %v330 = vld [vmem:[#allocation8 + $0x88] sm:$0xff]
        %v331 = vld [vmem:[#allocation8 + $0x90] sm:$0xff]
        %v332 = vld [vmem:[#allocation8 + $0x98] sm:$0xff]
        %v333 = vld [vmem:[#allocation8 + $0xa0] sm:$0xff]
        %v334 = vld [vmem:[#allocation8 + $0xa8] sm:$0xff]
        %v335 = vld [vmem:[#allocation8 + $0xb0] sm:$0xff]
        %v336 = vld [vmem:[#allocation8 + $0xb8] sm:$0xff]
        %v337 = vld [vmem:[#allocation8 + $0xc0] sm:$0xff]
        %v338 = vld [vmem:[#allocation8 + $0xc8] sm:$0xff]
        %v339 = vld [vmem:[#allocation8 + $0xd0] sm:$0xff]
        %v340 = vld [vmem:[#allocation8 + $0xd8] sm:$0xff]
        %v341 = vld [vmem:[#allocation8 + $0xe0] sm:$0xff]
        %v342 = vld [vmem:[#allocation8 + $0xe8] sm:$0xff]
        %v343 = vld [vmem:[#allocation8 + $0xf0] sm:$0xff]
        %v344 = vld [vmem:[#allocation8 + $0xf8] sm:$0xff]
        %v345 = vld [vmem:[%s265] sm:$0xff]
        %v346 = vld [vmem:[#allocation2] sm:$0xff]
        %v347 = vld [vmem:[#allocation2 + $0x8] sm:$0xff]
        %v350 = vunpack.c.l.b16 %v346
        %v351 = vunpack.c.h.b16 %v346
        %v352 = vunpack.c.l.b16 %v347
        %v353 = vunpack.c.h.b16 %v347
        %v354 = vpack.c.b16 %v352, %v350
        %v355 = vpack.c.b16 %v353, %v351
        %vm358 = vcmask 130048
        %v360 = vsel %vm358, %v312, 0
        %362 = vmatprep.subr.bf16.mxu0 %v355
        %363 = vmatpush1.bf16.msra.mxu0 %v354
        %364 = vmatprep.subr.bf16.mxu0 0
        %365 = vmatpush1.bf16.msra.mxu0 0
        %366 = vmatprep.subr.bf16.mxu0 0
        %367 = vmatpush1.bf16.msra.mxu0 0
        %368 = vmatprep.subr.bf16.mxu0 0
        %369 = vmatpush1.bf16.msra.mxu0 0
        %370 = vmatprep.subr.bf16.mxu0 0
        %371 = vmatpush1.bf16.msra.mxu0 0
        %372 = vmatprep.subr.bf16.mxu0 0
        %373 = vmatpush1.bf16.msra.mxu0 0
        %374 = vmatprep.subr.bf16.mxu0 0
        %375 = vmatpush1.bf16.msra.mxu0 0
        %376 = vmatprep.subr.bf16.mxu0 0
        %377 = vmatpush1.bf16.msra.mxu0 0
        %378 = vmatprep.subr.bf16.mxu0 0
        %379 = vmatpush1.bf16.msra.mxu0 0
        %380 = vmatprep.subr.bf16.mxu0 0
        %381 = vmatpush1.bf16.msra.mxu0 0
        %382 = vmatprep.subr.bf16.mxu0 0
        %383 = vmatpush1.bf16.msra.mxu0 0
        %384 = vmatprep.subr.bf16.mxu0 0
        %385 = vmatpush1.bf16.msra.mxu0 0
        %386 = vmatprep.subr.bf16.mxu0 0
        %387 = vmatpush1.bf16.msra.mxu0 0
        %388 = vmatprep.subr.bf16.mxu0 0
        %389 = vmatpush1.bf16.msra.mxu0 0
        %390 = vmatprep.subr.bf16.mxu0 0
        %391 = vmatpush1.bf16.msra.mxu0 0
        %392 = vmatprep.subr.bf16.mxu0 0
        %393 = vmatpush1.bf16.msra.mxu0 0
        %394 = vmatprep.mubr.bf16.mxu0 0
        %395 = vmatmul.mubr.bf16.gmra.mrb[0].mxu0 %v360
        %v396 = vpop.f32.mrb[0].mxu0
        %v397 = vadd.f32 0.0, %v396
        %v398 = vpop.f32.mrb[0].mxu0
        %v399 = vadd.f32 0.0, %v398
        %v400 = vpop.f32.mrb[0].mxu0
        %v401 = vpop.f32.mrb[0].mxu0
        %402 = vdwg.mxu0
        %v404 = vunpack.c.l.b16 %v345
        %v405 = vunpack.c.h.b16 %v345
        %v406 = vpack.c.b16 %v404, %v404
        %v407 = vpack.c.b16 %v405, %v405
        %v442 = vunpack.c.l.b16 %v313
        %v443 = vunpack.c.h.b16 %v313
        %v444 = vunpack.c.l.b16 %v314
        %v445 = vunpack.c.h.b16 %v314
        %v446 = vunpack.c.l.b16 %v315
        %v447 = vunpack.c.h.b16 %v315
        %v448 = vunpack.c.l.b16 %v316
        %v449 = vunpack.c.h.b16 %v316
        %v450 = vunpack.c.l.b16 %v317
        %v451 = vunpack.c.h.b16 %v317
        %v452 = vunpack.c.l.b16 %v318
        %v453 = vunpack.c.h.b16 %v318
        %v454 = vunpack.c.l.b16 %v319
        %v455 = vunpack.c.h.b16 %v319
        %v456 = vunpack.c.l.b16 %v320
        %v457 = vunpack.c.h.b16 %v320
        %v458 = vunpack.c.l.b16 %v321
        %v459 = vunpack.c.h.b16 %v321
        %v460 = vunpack.c.l.b16 %v322
        %v461 = vunpack.c.h.b16 %v322
        %v462 = vunpack.c.l.b16 %v323
        %v463 = vunpack.c.h.b16 %v323
        %v464 = vunpack.c.l.b16 %v324
        %v465 = vunpack.c.h.b16 %v324
        %v466 = vunpack.c.l.b16 %v325
        %v467 = vunpack.c.h.b16 %v325
        %v468 = vunpack.c.l.b16 %v326
        %v469 = vunpack.c.h.b16 %v326
        %v470 = vunpack.c.l.b16 %v327
        %v471 = vunpack.c.h.b16 %v327
        %v472 = vunpack.c.l.b16 %v328
        %v473 = vunpack.c.h.b16 %v328
        %v474 = vunpack.c.l.b16 %v329
        %v475 = vunpack.c.h.b16 %v329
        %v476 = vunpack.c.l.b16 %v330
        %v477 = vunpack.c.h.b16 %v330
        %v478 = vunpack.c.l.b16 %v331
        %v479 = vunpack.c.h.b16 %v331
        %v480 = vunpack.c.l.b16 %v332
        %v481 = vunpack.c.h.b16 %v332
        %v482 = vunpack.c.l.b16 %v333
        %v483 = vunpack.c.h.b16 %v333
        %v484 = vunpack.c.l.b16 %v334
        %v485 = vunpack.c.h.b16 %v334
        %v486 = vunpack.c.l.b16 %v335
        %v487 = vunpack.c.h.b16 %v335
        %v488 = vunpack.c.l.b16 %v336
        %v489 = vunpack.c.h.b16 %v336
        %v490 = vunpack.c.l.b16 %v337
        %v491 = vunpack.c.h.b16 %v337
        %v492 = vunpack.c.l.b16 %v338
        %v493 = vunpack.c.h.b16 %v338
        %v494 = vunpack.c.l.b16 %v339
        %v495 = vunpack.c.h.b16 %v339
        %v496 = vunpack.c.l.b16 %v340
        %v497 = vunpack.c.h.b16 %v340
        %v498 = vunpack.c.l.b16 %v341
        %v499 = vunpack.c.h.b16 %v341
        %v500 = vunpack.c.l.b16 %v342
        %v501 = vunpack.c.h.b16 %v342
        %v502 = vunpack.c.l.b16 %v343
        %v503 = vunpack.c.h.b16 %v343
        %v504 = vunpack.c.l.b16 %v344
        %v505 = vunpack.c.h.b16 %v344
        %v506 = vpack.c.b16 %v444, %v442
        %v507 = vpack.c.b16 %v445, %v443
        %v508 = vpack.c.b16 %v448, %v446
        %v509 = vpack.c.b16 %v449, %v447
        %v510 = vpack.c.b16 %v452, %v450
        %v511 = vpack.c.b16 %v453, %v451
        %v512 = vpack.c.b16 %v456, %v454
        %v513 = vpack.c.b16 %v457, %v455
        %v514 = vpack.c.b16 %v460, %v458
        %v515 = vpack.c.b16 %v461, %v459
        %v516 = vpack.c.b16 %v464, %v462
        %v517 = vpack.c.b16 %v465, %v463
        %v518 = vpack.c.b16 %v468, %v466
        %v519 = vpack.c.b16 %v469, %v467
        %v520 = vpack.c.b16 %v472, %v470
        %v521 = vpack.c.b16 %v473, %v471
        %v522 = vpack.c.b16 %v476, %v474
        %v523 = vpack.c.b16 %v477, %v475
        %v524 = vpack.c.b16 %v480, %v478
        %v525 = vpack.c.b16 %v481, %v479
        %v526 = vpack.c.b16 %v484, %v482
        %v527 = vpack.c.b16 %v485, %v483
        %v528 = vpack.c.b16 %v488, %v486
        %v529 = vpack.c.b16 %v489, %v487
        %v530 = vpack.c.b16 %v492, %v490
        %v531 = vpack.c.b16 %v493, %v491
        %v532 = vpack.c.b16 %v496, %v494
        %v533 = vpack.c.b16 %v497, %v495
        %v534 = vpack.c.b16 %v500, %v498
        %v535 = vpack.c.b16 %v501, %v499
        %v536 = vpack.c.b16 %v504, %v502
        %v537 = vpack.c.b16 %v505, %v503
        %570 = vmatprep.subr.bf16.mxu0 %v507
        %571 = vmatpush1.bf16.msra.mxu0 %v506
        %572 = vmatprep.subr.bf16.mxu0 %v509
        %573 = vmatpush1.bf16.msra.mxu0 %v508
        %574 = vmatprep.subr.bf16.mxu0 %v511
        %575 = vmatpush1.bf16.msra.mxu0 %v510
        %576 = vmatprep.subr.bf16.mxu0 %v513
        %577 = vmatpush1.bf16.msra.mxu0 %v512
        %578 = vmatprep.subr.bf16.mxu0 %v515
        %579 = vmatpush1.bf16.msra.mxu0 %v514
        %580 = vmatprep.subr.bf16.mxu0 %v517
        %581 = vmatpush1.bf16.msra.mxu0 %v516
        %582 = vmatprep.subr.bf16.mxu0 %v519
        %583 = vmatpush1.bf16.msra.mxu0 %v518
        %584 = vmatprep.subr.bf16.mxu0 %v521
        %585 = vmatpush1.bf16.msra.mxu0 %v520
        %586 = vmatprep.subr.bf16.mxu0 %v523
        %587 = vmatpush1.bf16.msra.mxu0 %v522
        %588 = vmatprep.subr.bf16.mxu0 %v525
        %589 = vmatpush1.bf16.msra.mxu0 %v524
        %590 = vmatprep.subr.bf16.mxu0 %v527
        %591 = vmatpush1.bf16.msra.mxu0 %v526
        %592 = vmatprep.subr.bf16.mxu0 %v529
        %593 = vmatpush1.bf16.msra.mxu0 %v528
        %594 = vmatprep.subr.bf16.mxu0 %v531
        %595 = vmatpush1.bf16.msra.mxu0 %v530
        %596 = vmatprep.subr.bf16.mxu0 %v533
        %597 = vmatpush1.bf16.msra.mxu0 %v532
        %598 = vmatprep.subr.bf16.mxu0 %v535
        %599 = vmatpush1.bf16.msra.mxu0 %v534
        %600 = vmatprep.subr.bf16.mxu0 %v537
        %601 = vmatpush1.bf16.msra.mxu0 %v536
        %602 = vmatprep.mubr.bf16.mxu0 %v407
        %603 = vmatmul.mubr.bf16.gmra.mrb[0].mxu0 %v406
        %v604 = vpop.f32.mrb[0].mxu0
        %v605 = vadd.f32 %v397, %v604
        %v606 = vpop.f32.mrb[0].mxu0
        %v607 = vadd.f32 %v399, %v606
        %v608 = vpop.f32.mrb[0].mxu0
        %v609 = vpop.f32.mrb[0].mxu0
        %610 = vdwg.mxu0
        %v611 = vmax.f32 %v605, 0.0
        %v612 = vmax.f32 %v607, 0.0
        %613 = vst [vmem:[%s307] sm:$0xff] %v611
        %614 = vst [vmem:[%s307 + $0x8] sm:$0xff] %v612
        %s615 = scalar_lea.vmem %s265, 8 [#allocation5]
        %v616 = vld [vmem:[%s615] sm:$0xff]
        %s617 = scalar_lea.vmem [#allocation2], 16
        %v618 = vld [vmem:[%s617] sm:$0xff]
        %v619 = vld [vmem:[%s617 + $0x8] sm:$0xff]
        %v622 = vunpack.c.l.b16 %v618
        %v623 = vunpack.c.h.b16 %v618
        %v624 = vunpack.c.l.b16 %v619
        %v625 = vunpack.c.h.b16 %v619
        %v626 = vpack.c.b16 %v624, %v622
        %v627 = vpack.c.b16 %v625, %v623
        %630 = vmatprep.subr.bf16.mxu0 %v627
        %631 = vmatpush1.bf16.msra.mxu0 %v626
        %632 = vmatprep.subr.bf16.mxu0 0
        %633 = vmatpush1.bf16.msra.mxu0 0
        %634 = vmatprep.subr.bf16.mxu0 0
        %635 = vmatpush1.bf16.msra.mxu0 0
        %636 = vmatprep.subr.bf16.mxu0 0
        %637 = vmatpush1.bf16.msra.mxu0 0
        %638 = vmatprep.subr.bf16.mxu0 0
        %639 = vmatpush1.bf16.msra.mxu0 0
        %640 = vmatprep.subr.bf16.mxu0 0
        %641 = vmatpush1.bf16.msra.mxu0 0
        %642 = vmatprep.subr.bf16.mxu0 0
        %643 = vmatpush1.bf16.msra.mxu0 0
        %644 = vmatprep.subr.bf16.mxu0 0
        %645 = vmatpush1.bf16.msra.mxu0 0
        %646 = vmatprep.subr.bf16.mxu0 0
        %647 = vmatpush1.bf16.msra.mxu0 0
        %648 = vmatprep.subr.bf16.mxu0 0
        %649 = vmatpush1.bf16.msra.mxu0 0
        %650 = vmatprep.subr.bf16.mxu0 0
        %651 = vmatpush1.bf16.msra.mxu0 0
        %652 = vmatprep.subr.bf16.mxu0 0
        %653 = vmatpush1.bf16.msra.mxu0 0
        %654 = vmatprep.subr.bf16.mxu0 0
        %655 = vmatpush1.bf16.msra.mxu0 0
        %656 = vmatprep.subr.bf16.mxu0 0
        %657 = vmatpush1.bf16.msra.mxu0 0
        %658 = vmatprep.subr.bf16.mxu0 0
        %659 = vmatpush1.bf16.msra.mxu0 0
        %660 = vmatprep.subr.bf16.mxu0 0
        %661 = vmatpush1.bf16.msra.mxu0 0
        %662 = vmatprep.mubr.bf16.mxu0 0
        %663 = vmatmul.mubr.bf16.gmra.mrb[0].mxu0 %v360
        %v664 = vpop.f32.mrb[0].mxu0
        %v665 = vadd.f32 0.0, %v664
        %v666 = vpop.f32.mrb[0].mxu0
        %v667 = vadd.f32 0.0, %v666
        %v668 = vpop.f32.mrb[0].mxu0
        %v669 = vpop.f32.mrb[0].mxu0
        %670 = vdwg.mxu0
        %v672 = vunpack.c.l.b16 %v616
        %v673 = vunpack.c.h.b16 %v616
        %v674 = vpack.c.b16 %v672, %v672
        %v675 = vpack.c.b16 %v673, %v673
        %678 = vmatprep.subr.bf16.mxu0 %v507
        %679 = vmatpush1.bf16.msra.mxu0 %v506
        %680 = vmatprep.subr.bf16.mxu0 %v509
        %681 = vmatpush1.bf16.msra.mxu0 %v508
        %682 = vmatprep.subr.bf16.mxu0 %v511
        %683 = vmatpush1.bf16.msra.mxu0 %v510
        %684 = vmatprep.subr.bf16.mxu0 %v513
        %685 = vmatpush1.bf16.msra.mxu0 %v512
        %686 = vmatprep.subr.bf16.mxu0 %v515
        %687 = vmatpush1.bf16.msra.mxu0 %v514
        %688 = vmatprep.subr.bf16.mxu0 %v517
        %689 = vmatpush1.bf16.msra.mxu0 %v516
        %690 = vmatprep.subr.bf16.mxu0 %v519
        %691 = vmatpush1.bf16.msra.mxu0 %v518
        %692 = vmatprep.subr.bf16.mxu0 %v521
        %693 = vmatpush1.bf16.msra.mxu0 %v520
        %694 = vmatprep.subr.bf16.mxu0 %v523
        %695 = vmatpush1.bf16.msra.mxu0 %v522
        %696 = vmatprep.subr.bf16.mxu0 %v525
        %697 = vmatpush1.bf16.msra.mxu0 %v524
        %698 = vmatprep.subr.bf16.mxu0 %v527
        %699 = vmatpush1.bf16.msra.mxu0 %v526
        %700 = vmatprep.subr.bf16.mxu0 %v529
        %701 = vmatpush1.bf16.msra.mxu0 %v528
        %702 = vmatprep.subr.bf16.mxu0 %v531
        %703 = vmatpush1.bf16.msra.mxu0 %v530
        %704 = vmatprep.subr.bf16.mxu0 %v533
        %705 = vmatpush1.bf16.msra.mxu0 %v532
        %706 = vmatprep.subr.bf16.mxu0 %v535
        %707 = vmatpush1.bf16.msra.mxu0 %v534
        %708 = vmatprep.subr.bf16.mxu0 %v537
        %709 = vmatpush1.bf16.msra.mxu0 %v536
        %710 = vmatprep.mubr.bf16.mxu0 %v675
        %711 = vmatmul.mubr.bf16.gmra.mrb[0].mxu0 %v674
        %v712 = vpop.f32.mrb[0].mxu0
        %v713 = vadd.f32 %v665, %v712
        %v714 = vpop.f32.mrb[0].mxu0
        %v715 = vadd.f32 %v667, %v714
        %v716 = vpop.f32.mrb[0].mxu0
        %v717 = vpop.f32.mrb[0].mxu0
        %718 = vdwg.mxu0
        %v719 = vmax.f32 %v713, 0.0
        %v720 = vmax.f32 %v715, 0.0
        %s721 = scalar_lea.vmem %s307, 16 [#allocation10]
        %722 = vst [vmem:[%s721] sm:$0xff] %v719
        %723 = vst [vmem:[%s721 + $0x8] sm:$0xff] %v720
        %s724 = sand.u32 %s146, 1
        %s725 = scalar_lea.sflag [#allocation4], %s724
        %s726 = sand.u32 %s146, 1
        %s727 = smul.addr %s726, 32
        %s728 = scalar_lea.vmem [#allocation10], %s727
        // Predicated region
        $region53: #{tpu_custom_call.1} parent=35 // pred_check
          %p729 = pneg %p156
        $region54: #{tpu_custom_call.1} parent=35 // pred_check_branch
          %731 = sbr.rel (%p729) target = $region56
        $region55: #{tpu_custom_call.1} parent=35 // pred_region
          %s732 = smul.u32 2, %s27
          %s734 = ssub.s32 512, 512
          %735 = vsyncadd %s725, %s734
          %s736 = smul.addr %s28, 2
          %s737 = smul.addr %s732, 4
          %s738 = sadd.s32 %s736, %s737
          %s739 = smul.addr %s738, 128
          %s740 = scalar_lea.hbm %s4, %s739
          %s741 = sshll.u32 %s728, 4
          %s742 = int_to_ptr.vmem [resolvable:$true] %s741
          %747 = dma.vmem_to_hbm [thread:$0]  %s742, 512, %s740, %s725, 256, 512, 16
        $region56: #{tpu_custom_call.1} parent=35 // pred_fallthru
          _
      $region36: #{tpu_custom_call.1} parent=5 // pred_fallthru
        _
      %p748 = scmp.le.s32.totalorder 2, %s18
      // Predicated region
      $region57: #{tpu_custom_call.1} parent=5 // pred_check
        %p749 = pneg %p748
      $region58: #{tpu_custom_call.1} parent=5 // pred_check_branch
        %751 = sbr.rel (%p749) target = $region60
      $region59: #{tpu_custom_call.1} parent=5 // pred_region
        %s752 = ssub.s32 %s18, 2
        // Predicated region
        $region61: #{tpu_custom_call.1} parent=59 // pred_check
          %p753 = pneg %p162
        $region62: #{tpu_custom_call.1} parent=59 // pred_check_branch
          %755 = sbr.rel (%p753) target = $region64
        $region63: #{tpu_custom_call.1} parent=59 // pred_region
          %s756 = sand.u32 %s147, 1
          %s757 = scalar_lea.sflag [#allocation4], %s756
          %s758 = sand.u32 %s147, 1
          %s759 = smul.addr %s758, 32
          %s760 = scalar_lea.vmem [#allocation10], %s759
          %761 = dma.done %s757, 512
        $region64: #{tpu_custom_call.1} parent=59 // pred_fallthru
          _
      $region60: #{tpu_custom_call.1} parent=5 // pred_fallthru
        _
    $region6: #{tpu_custom_call.1} parent=1 // loop_footer
      %s22 = sadd.s32 1, %s18
    $region7: #{tpu_custom_call.1} parent=1 // loop_footer_branch
      %17 = sbr.rel target = $region3
    $region8: #{tpu_custom_call.1} parent=1 // loop_exit
      _
    %762 = vsyncpa [#allocation3], 1
    %s763 = scalar_lea.sflag [#allocation3], 1
    %764 = vsyncpa %s763, 1
    %765 = vsyncpa [#allocation6], 1
    %s766 = scalar_lea.sflag [#allocation6], 1
    %767 = vsyncpa %s766, 1
    %768 = vsyncpa [#allocation9], 1
    %769 = vsyncpa [#allocation4], 1
    %s770 = scalar_lea.sflag [#allocation4], 1
    %771 = vsyncpa %s770, 1

// kernel: tpu_custom_call.1
$region0: #{tpu_custom_call.1}
  #allocation0 [shape = 'u32[]', space=smem, size = 0x4, offset = 0x4, fixed_abs, tag = 'smem constant byte address 0x4 - core index']
  #allocation1 [shape = 'u32[144,128]{1,0:T(1,128)}', space=vmem, size = 0x12000, scoped, tag = 'internal scratch']
  %s0 = inlined_call_operand.hbm [shape: bf16[2,16,256], index: 0, kind: input, shape index: {}]
  %s1 = inlined_call_operand.hbm [shape: bf16[2,16,256], index: 1, kind: input, shape index: {}]
  %s2 = inlined_call_operand.hbm [shape: bf16[16,16], index: 2, kind: input, shape index: {}]
  %s3 = inlined_call_operand.hbm [shape: bf16[256,256], index: 3, kind: input, shape index: {}]
  %s4 = inlined_call_operand.hbm [shape: f32[2,16,256], index: 4, kind: output, shape index: {}]
  %s5 = sld [smem:[#allocation0]]
  $region65: #{tpu_custom_call.1} parent=0
    _
  %s7 = ssub.s32 1, %s5
  %s8 = scalar_select 0, %s7, %s5
  $region1: #{tpu_custom_call.1} parent=0
    #allocation2 [shape = 'u8[16384]{0}', space=vmem, size = 0x4000, scoped, tag = 'input window, operand 0, single buffered']
    #allocation3 [shape = 's32[2]{0}', space=sflag, size = 0x8, scoped, tag = 'scoped memory for tpu_custom_call.1']
    #allocation4 [shape = 's32[2]{0}', space=sflag, size = 0x8, scoped, tag = 'scoped memory for tpu_custom_call.1']
    #allocation5 [shape = 'u8[16384]{0}', space=vmem, size = 0x4000, scoped, tag = 'input window, operand 1']
    #allocation6 [shape = 's32[2]{0}', space=sflag, size = 0x8, scoped, tag = 'scoped memory for tpu_custom_call.1']
    #allocation7 [shape = 'u8[4096]{0}', space=vmem, size = 0x1000, scoped, tag = 'input window, operand 2']
    #allocation8 [shape = 'u8[131072]{0}', space=vmem, size = 0x20000, scoped, tag = 'input window, operand 3, single buffered']
    #allocation9 [shape = 's32[1]{0}', space=sflag, size = 0x4, scoped, tag = 'scoped memory for tpu_custom_call.1']
    #allocation10 [shape = 'u8[32768]{0}', space=vmem, size = 0x8000, scoped, tag = 'output window, operand 0']
    %9 = vsyncpa [#allocation3], 0
    %10 = vsyncpa [#allocation6], 0
    %s11 = scalar_lea.sflag [#allocation6], 1
    %12 = vsyncpa %s11, 0
    %13 = vsyncpa [#allocation9], 0
    %14 = vsyncpa [#allocation4], 0
    %s15 = scalar_lea.sflag [#allocation4], 1
    %16 = vsyncpa %s15, 0
    loop: start=0, step=1, limit=4
    $region2: #{tpu_custom_call.1} parent=1 // loop_pre_header
      _
    $region3: #{tpu_custom_call.1} parent=1 // loop_header
      %s18 = sphi 0, %s22
      %p19 = scmp.ge.s32.totalorder %s18, 4
      %s25 = sphi 0, %s37
      %s26 = sphi 0, %s33
      %s27 = sphi 0, %s25
      %s28 = sphi 0, %s26
      %s29 = sphi 0, %s27
      %s30 = sphi 0, %s28
      %s40 = sphi 0, %s42
      %s43 = sphi 0, %s40
      %s44 = sphi 0, %s43
      %s60 = sphi 0, %s44
      %s68 = sphi 0, %s70
      %s71 = sphi 0, %s68
      %s72 = sphi 0, %s71
      %s88 = sphi 0, %s72
      %s94 = sphi 0, %s96
      %s97 = sphi 0, %s94
      %s98 = sphi 0, %s97
      %s114 = sphi 0, %s98
      %s118 = sphi 0, %s118
      %s120 = sphi 0, %s118
      %s121 = sphi 0, %s120
      %s135 = sphi 0, %s121
      %s143 = sphi 0, %s145
      %s146 = sphi 0, %s143
      %s147 = sphi 0, %s146
      %s163 = sphi 0, %s147
    $region4: #{tpu_custom_call.1} parent=1 // loop_header_branch
      %21 = sbr.rel (%p19) target = $region8
    $region5: #{tpu_custom_call.1} parent=1 // loop_body
      %s23 = ssub.s32 %s18, 1
      %s24 = ssub.s32 %s18, 2
      %s31 = sadd.s32 1, %s26
      %p32 = scmp.ge.s32.totalorder %s31, 2
      %s33 = scalar_select %p32, 0, %s31
      %s34 = sadd.s32 1, %s25
      %s35 = scalar_select %p32, %s34, %s25
      %p36 = scmp.ge.s32.totalorder %s35, 1
      %s37 = scalar_select %p36, 0, %s35
      %s38 = ssub.s32 %s25, %s37
      %p39 = scmp.eq.s32.totalorder %s38, 0
      %s41 = sadd.s32 %s40, 1
      %s42 = scalar_select %p39, %s40, %s41
      %p45 = pneg %p39
      %p46 = scmp.eq.s32.totalorder %s18, 1
      %p47 = por %p45, %p46
      %p48 = scmp.ne.s32.totalorder %s40, %s43
      %p49 = scmp.eq.s32.totalorder %s18, 0
      %p50 = por %p48, %p49
      %p51 = scmp.ne.s32.totalorder %s40, %s43
      %p52 = scmp.eq.s32.totalorder %s23, 1
      %p53 = por %p51, %p52
      %p54 = scmp.ne.s32.totalorder %s43, %s44
      %p55 = scmp.eq.s32.totalorder %s23, 0
      %p56 = por %p54, %p55
      %p57 = scmp.ne.s32.totalorder %s43, %s44
      %p58 = scmp.eq.s32.totalorder %s24, 1
      %p59 = por %p57, %p58
      %p61 = scmp.ne.s32.totalorder %s44, %s60
      %p62 = scmp.eq.s32.totalorder %s24, 0
      %p63 = por %p61, %p62
      %s64 = ssub.s32 %s25, %s37
      %s65 = ssub.s32 %s26, %s33
      %s66 = sor.u32 %s64, %s65
      %p67 = scmp.eq.s32.totalorder %s66, 0
      %s69 = sadd.s32 %s68, 1
      %s70 = scalar_select %p67, %s68, %s69
      %p73 = pneg %p67
      %p74 = scmp.eq.s32.totalorder %s18, 1
      %p75 = por %p73, %p74
      %p76 = scmp.ne.s32.totalorder %s68, %s71
      %p77 = scmp.eq.s32.totalorder %s18, 0
      %p78 = por %p76, %p77
      %p79 = scmp.ne.s32.totalorder %s68, %s71
      %p80 = scmp.eq.s32.totalorder %s23, 1
      %p81 = por %p79, %p80
      %p82 = scmp.ne.s32.totalorder %s71, %s72
      %p83 = scmp.eq.s32.totalorder %s23, 0
      %p84 = por %p82, %p83
      %p85 = scmp.ne.s32.totalorder %s71, %s72
      %p86 = scmp.eq.s32.totalorder %s24, 1
      %p87 = por %p85, %p86
      %p89 = scmp.ne.s32.totalorder %s72, %s88
      %p90 = scmp.eq.s32.totalorder %s24, 0
      %p91 = por %p89, %p90
      %s92 = ssub.s32 %s26, %s33
      %p93 = scmp.eq.s32.totalorder %s92, 0
      %s95 = sadd.s32 %s94, 1
      %s96 = scalar_select %p93, %s94, %s95
      %p99 = pneg %p93
      %p100 = scmp.eq.s32.totalorder %s18, 1
      %p101 = por %p99, %p100
      %p102 = scmp.ne.s32.totalorder %s94, %s97
      %p103 = scmp.eq.s32.totalorder %s18, 0
      %p104 = por %p102, %p103
      %p105 = scmp.ne.s32.totalorder %s94, %s97
      %p106 = scmp.eq.s32.totalorder %s23, 1
      %p107 = por %p105, %p106
      %p108 = scmp.ne.s32.totalorder %s97, %s98
      %p109 = scmp.eq.s32.totalorder %s23, 0
      %p110 = por %p108, %p109
      %p111 = scmp.ne.s32.totalorder %s97, %s98
      %p112 = scmp.eq.s32.totalorder %s24, 1
      %p113 = por %p111, %p112
      %p115 = scmp.ne.s32.totalorder %s98, %s114
      %p116 = scmp.eq.s32.totalorder %s24, 0
      %p117 = por %p115, %p116
      %s119 = sadd.s32 %s118, 1
      %p122 = scmp.eq.s32.totalorder %s18, 1
      %p123 = scmp.ne.s32.totalorder %s118, %s120
      %p124 = scmp.eq.s32.totalorder %s18, 0
      %p125 = por %p123, %p124
      %p126 = scmp.ne.s32.totalorder %s118, %s120
      %p127 = scmp.eq.s32.totalorder %s23, 1
      %p128 = por %p126, %p127
      %p129 = scmp.ne.s32.totalorder %s120, %s121
      %p130 = scmp.eq.s32.totalorder %s23, 0
      %p131 = por %p129, %p130
      %p132 = scmp.ne.s32.totalorder %s120, %s121
      %p133 = scmp.eq.s32.totalorder %s24, 1
      %p134 = por %p132, %p133
      %p136 = scmp.ne.s32.totalorder %s121, %s135
      %p137 = scmp.eq.s32.totalorder %s24, 0
      %p138 = por %p136, %p137
      %s139 = ssub.s32 %s25, %s37
      %s140 = ssub.s32 %s26, %s33
      %s141 = sor.u32 %s139, %s140
      %p142 = scmp.eq.s32.totalorder %s141, 0
      %s144 = sadd.s32 %s143, 1
      %s145 = scalar_select %p142, %s143, %s144
      %p148 = pneg %p142
      %p149 = scmp.eq.s32.totalorder %s18, 1
      %p150 = por %p148, %p149
      %p151 = scmp.ne.s32.totalorder %s143, %s146
      %p152 = scmp.eq.s32.totalorder %s18, 0
      %p153 = por %p151, %p152
      %p154 = scmp.ne.s32.totalorder %s143, %s146
      %p155 = scmp.eq.s32.totalorder %s23, 1
      %p156 = por %p154, %p155
      %p157 = scmp.ne.s32.totalorder %s146, %s147
      %p158 = scmp.eq.s32.totalorder %s23, 0
      %p159 = por %p157, %p158
      %p160 = scmp.ne.s32.totalorder %s146, %s147
      %p161 = scmp.eq.s32.totalorder %s24, 1
      %p162 = por %p160, %p161
      %p164 = scmp.ne.s32.totalorder %s147, %s163
      %p165 = scmp.eq.s32.totalorder %s24, 0
      %p166 = por %p164, %p165
      %p167 = scmp.le.s32.totalorder 1, %s18
      %p168 = scmp.lt.s32.totalorder %s18, 3
      %p169 = pnand %p167, %p168
      %p170 = pneg %p169
      // Predicated region
      $region9: #{tpu_custom_call.1} parent=5 // pred_check
        _
      $region10: #{tpu_custom_call.1} parent=5 // pred_check_branch
        %172 = sbr.rel (%p169) target = $region12
      $region11: #{tpu_custom_call.1} parent=5 // pred_region
        %s173 = ssub.s32 %s18, 1
        // Predicated region
        $region13: #{tpu_custom_call.1} parent=11 // pred_check
          %p174 = pneg %p56
        $region14: #{tpu_custom_call.1} parent=11 // pred_check_branch
          %176 = sbr.rel (%p174) target = $region16
        $region15: #{tpu_custom_call.1} parent=11 // pred_region
          %s177 = smul.u32 2, %s27
          %s179 = ssub.s32 512, 512
          %180 = vsyncadd [#allocation3], %s179
          %s181 = smul.addr %s177, 4
          %s182 = smul.addr %s181, 64
          %s183 = scalar_lea.hbm %s0, %s182
          %s184 = sshll.u32 [#allocation2], 4
          %s185 = int_to_ptr.vmem [resolvable:$true] %s184
          %190 = dma.hbm_to_vmem [thread:$0]  %s183, 512, %s185, [#allocation3], 128, 128, 8
        $region16: #{tpu_custom_call.1} parent=11 // pred_fallthru
          _
        // Predicated region
        $region17: #{tpu_custom_call.1} parent=11 // pred_check
          %p191 = pneg %p131
        $region18: #{tpu_custom_call.1} parent=11 // pred_check_branch
          %193 = sbr.rel (%p191) target = $region20
        $region19: #{tpu_custom_call.1} parent=11 // pred_region
          %s195 = ssub.s32 4096, 4096
          %196 = vsyncadd [#allocation9], %s195
          %s197 = sshll.u32 [#allocation8], 4
          %s198 = int_to_ptr.vmem [resolvable:$true] %s197
          %203 = dma.hbm_to_vmem [thread:$0]  %s3, 4096, %s198, [#allocation9], 128, 128, 8
        $region20: #{tpu_custom_call.1} parent=11 // pred_fallthru
          _
      $region12: #{tpu_custom_call.1} parent=5 // pred_fallthru
        _
      %p204 = scmp.lt.s32.totalorder %s18, 2
      // Predicated region
      $region21: #{tpu_custom_call.1} parent=5 // pred_check
        %p205 = pneg %p204
      $region22: #{tpu_custom_call.1} parent=5 // pred_check_branch
        %207 = sbr.rel (%p205) target = $region24
      $region23: #{tpu_custom_call.1} parent=5 // pred_region
        // Predicated region
        $region25: #{tpu_custom_call.1} parent=23 // pred_check
          %p208 = pneg %p78
        $region26: #{tpu_custom_call.1} parent=23 // pred_check_branch
          %210 = sbr.rel (%p208) target = $region28
        $region27: #{tpu_custom_call.1} parent=23 // pred_region
          %s211 = sand.u32 %s18, 1
          %s212 = scalar_lea.sflag [#allocation6], %s211
          %s213 = sand.u32 %s68, 1
          %s214 = smul.addr %s213, 16
          %s215 = scalar_lea.vmem [#allocation5], %s214
          %s216 = smul.u32 2, %s25
          %s218 = ssub.s32 256, 256
          %219 = vsyncadd %s212, %s218
          %s220 = smul.addr %s26, 2
          %s221 = smul.addr %s216, 4
          %s222 = sadd.s32 %s220, %s221
          %s223 = smul.addr %s222, 64
          %s224 = scalar_lea.hbm %s1, %s223
          %s225 = sshll.u32 %s215, 4
          %s226 = int_to_ptr.vmem [resolvable:$true] %s225
          %231 = dma.hbm_to_vmem [thread:$0]  %s224, 256, %s226, %s212, 256, 128, 8
        $region28: #{tpu_custom_call.1} parent=23 // pred_fallthru
          _
        // Predicated region
        $region29: #{tpu_custom_call.1} parent=23 // pred_check
          %p232 = pneg %p104
        $region30: #{tpu_custom_call.1} parent=23 // pred_check_branch
          %234 = sbr.rel (%p232) target = $region32
        $region31: #{tpu_custom_call.1} parent=23 // pred_region
          %s235 = sand.u32 %s18, 1
          %s236 = scalar_lea.sflag [#allocation6], %s235
          %s237 = sand.u32 %s94, 1
          %s238 = smul.addr %s237, 4
          %s239 = scalar_lea.vmem [#allocation7], %s238
          %s241 = ssub.s32 64, 64
          %242 = vsyncadd %s236, %s241
          %s243 = smul.addr %s26, 64
          %s244 = scalar_lea.hbm %s2, %s243
          %s246 = sshll.u32 %s239, 4
          %s247 = int_to_ptr.vmem [resolvable:$true] %s246
          %249 = dma.hbm_to_vmem [thread:$0]  %s244, 64, %s247, %s236
        $region32: #{tpu_custom_call.1} parent=23 // pred_fallthru
          _
      $region24: #{tpu_custom_call.1} parent=5 // pred_fallthru
        _
      %p250 = scmp.le.s32.totalorder 1, %s18
      %p251 = scmp.lt.s32.totalorder %s18, 3
      %p252 = pnand %p250, %p251
      %p253 = pneg %p252
      // Predicated region
      $region33: #{tpu_custom_call.1} parent=5 // pred_check
        _
      $region34: #{tpu_custom_call.1} parent=5 // pred_check_branch
        %255 = sbr.rel (%p252) target = $region36
      $region35: #{tpu_custom_call.1} parent=5 // pred_region
        %s256 = ssub.s32 %s18, 1
        // Predicated region
        $region37: #{tpu_custom_call.1} parent=35 // pred_check
          %p257 = pneg %p56
        $region38: #{tpu_custom_call.1} parent=35 // pred_check_branch
          %259 = sbr.rel (%p257) target = $region40
        $region39: #{tpu_custom_call.1} parent=35 // pred_region
          %260 = dma.done [#allocation3], 512
        $region40: #{tpu_custom_call.1} parent=35 // pred_fallthru
          _
        %s261 = sand.u32 %s23, 1
        %s262 = scalar_lea.sflag [#allocation6], %s261
        %s263 = sand.u32 %s71, 1
        %s264 = smul.addr %s263, 16
        %s265 = scalar_lea.vmem [#allocation5], %s264
        // Predicated region
        $region41: #{tpu_custom_call.1} parent=35 // pred_check
          %p266 = pneg %p84
        $region42: #{tpu_custom_call.1} parent=35 // pred_check_branch
          %268 = sbr.rel (%p266) target = $region44
        $region43: #{tpu_custom_call.1} parent=35 // pred_region
          %269 = dma.done %s262, 256
        $region44: #{tpu_custom_call.1} parent=35 // pred_fallthru
          _
        %s270 = sand.u32 %s23, 1
        %s271 = scalar_lea.sflag [#allocation6], %s270
        %s272 = sand.u32 %s97, 1
        %s273 = smul.addr %s272, 4
        %s274 = scalar_lea.vmem [#allocation7], %s273
        // Predicated region
        $region45: #{tpu_custom_call.1} parent=35 // pred_check
          %p275 = pneg %p110
        $region46: #{tpu_custom_call.1} parent=35 // pred_check_branch
          %277 = sbr.rel (%p275) target = $region48
        $region47: #{tpu_custom_call.1} parent=35 // pred_region
          %278 = dma.done %s271, 64
        $region48: #{tpu_custom_call.1} parent=35 // pred_fallthru
          _
        // Predicated region
        $region49: #{tpu_custom_call.1} parent=35 // pred_check
          %p279 = pneg %p131
        $region50: #{tpu_custom_call.1} parent=35 // pred_check_branch
          %281 = sbr.rel (%p279) target = $region52
        $region51: #{tpu_custom_call.1} parent=35 // pred_region
          %282 = dma.done [#allocation9], 4096
        $region52: #{tpu_custom_call.1} parent=35 // pred_fallthru
          _
        %p283 = pneg %p56
        %p284 = pneg %p53
        %s285 = sand.u32 %s23, 1
        %s286 = scalar_lea.sflag [#allocation6], %s285
        %s287 = sand.u32 %s71, 1
        %s288 = smul.addr %s287, 16
        %s289 = scalar_lea.vmem [#allocation5], %s288
        %p290 = pneg %p84
        %p291 = pneg %p81
        %s292 = sand.u32 %s23, 1
        %s293 = scalar_lea.sflag [#allocation6], %s292
        %s294 = sand.u32 %s97, 1
        %s295 = smul.addr %s294, 4
        %s296 = scalar_lea.vmem [#allocation7], %s295
        %p297 = pneg %p110
        %p298 = pneg %p107
        %p299 = pneg %p131
        %p300 = pneg %p128
        %p301 = pneg %p159
        %p302 = pneg %p156
        %s303 = sand.u32 %s146, 1
        %s304 = scalar_lea.sflag [#allocation4], %s303
        %s305 = sand.u32 %s146, 1
        %s306 = smul.addr %s305, 32
        %s307 = scalar_lea.vmem [#allocation10], %s306
        %s308 = smul.u32 2, %s27
        %s309 = smul.u32 2, %s27
        %s310 = smul.u32 2, %s27
        %v312 = vld [vmem:[%s274] sm:$0xf]
        %v313 = vld [vmem:[#allocation8] sm:$0xff]
        %v314 = vld [vmem:[#allocation8 + $0x8] sm:$0xff]
        %v315 = vld [vmem:[#allocation8 + $0x10] sm:$0xff]
        %v316 = vld [vmem:[#allocation8 + $0x18] sm:$0xff]
        %v317 = vld [vmem:[#allocation8 + $0x20] sm:$0xff]
        %v318 = vld [vmem:[#allocation8 + $0x28] sm:$0xff]
        %v319 = vld [vmem:[#allocation8 + $0x30] sm:$0xff]
        %v320 = vld [vmem:[#allocation8 + $0x38] sm:$0xff]
        %v321 = vld [vmem:[#allocation8 + $0x40] sm:$0xff]
        %v322 = vld [vmem:[#allocation8 + $0x48] sm:$0xff]
        %v323 = vld [vmem:[#allocation8 + $0x50] sm:$0xff]
        %v324 = vld [vmem:[#allocation8 + $0x58] sm:$0xff]
        %v325 = vld [vmem:[#allocation8 + $0x60] sm:$0xff]
        %v326 = vld [vmem:[#allocation8 + $0x68] sm:$0xff]
        %v327 = vld [vmem:[#allocation8 + $0x70] sm:$0xff]
        %v328 = vld [vmem:[#allocation8 + $0x78] sm:$0xff]
        %v329 = vld [vmem:[#allocation8 + $0x80] sm:$0xff]
        %v330 = vld [vmem:[#allocation8 + $0x88] sm:$0xff]
        %v331 = vld [vmem:[#allocation8 + $0x90] sm:$0xff]
        %v332 = vld [vmem:[#allocation8 + $0x98] sm:$0xff]
        %v333 = vld [vmem:[#allocation8 + $0xa0] sm:$0xff]
        %v334 = vld [vmem:[#allocation8 + $0xa8] sm:$0xff]
        %v335 = vld [vmem:[#allocation8 + $0xb0] sm:$0xff]
        %v336 = vld [vmem:[#allocation8 + $0xb8] sm:$0xff]
        %v337 = vld [vmem:[#allocation8 + $0xc0] sm:$0xff]
        %v338 = vld [vmem:[#allocation8 + $0xc8] sm:$0xff]
        %v339 = vld [vmem:[#allocation8 + $0xd0] sm:$0xff]
        %v340 = vld [vmem:[#allocation8 + $0xd8] sm:$0xff]
        %v341 = vld [vmem:[#allocation8 + $0xe0] sm:$0xff]
        %v342 = vld [vmem:[#allocation8 + $0xe8] sm:$0xff]
        %v343 = vld [vmem:[#allocation8 + $0xf0] sm:$0xff]
        %v344 = vld [vmem:[#allocation8 + $0xf8] sm:$0xff]
        %v345 = vld [vmem:[%s265] sm:$0xff]
        %v346 = vld [vmem:[#allocation2] sm:$0xff]
        %v347 = vld [vmem:[#allocation2 + $0x8] sm:$0xff]
        %v350 = vunpack.c.l.b16 %v346
        %v351 = vunpack.c.h.b16 %v346
        %v352 = vunpack.c.l.b16 %v347
        %v353 = vunpack.c.h.b16 %v347
        %v354 = vpack.c.b16 %v352, %v350
        %v355 = vpack.c.b16 %v353, %v351
        %vm358 = vcmask 130048
        %v360 = vsel %vm358, %v312, 0
        %362 = vmatprep.subr.bf16.mxu0 %v355
        %363 = vmatpush1.bf16.msra.mxu0 %v354
        %364 = vmatprep.subr.bf16.mxu0 0
        %365 = vmatpush1.bf16.msra.mxu0 0
        %366 = vmatprep.subr.bf16.mxu0 0
        %367 = vmatpush1.bf16.msra.mxu0 0
        %368 = vmatprep.subr.bf16.mxu0 0
        %369 = vmatpush1.bf16.msra.mxu0 0
        %370 = vmatprep.subr.bf16.mxu0 0
        %371 = vmatpush1.bf16.msra.mxu0 0
        %372 = vmatprep.subr.bf16.mxu0 0
        %373 = vmatpush1.bf16.msra.mxu0 0
        %374 = vmatprep.subr.bf16.mxu0 0
        %375 = vmatpush1.bf16.msra.mxu0 0
        %376 = vmatprep.subr.bf16.mxu0 0
        %377 = vmatpush1.bf16.msra.mxu0 0
        %378 = vmatprep.subr.bf16.mxu0 0
        %379 = vmatpush1.bf16.msra.mxu0 0
        %380 = vmatprep.subr.bf16.mxu0 0
        %381 = vmatpush1.bf16.msra.mxu0 0
        %382 = vmatprep.subr.bf16.mxu0 0
        %383 = vmatpush1.bf16.msra.mxu0 0
        %384 = vmatprep.subr.bf16.mxu0 0
        %385 = vmatpush1.bf16.msra.mxu0 0
        %386 = vmatprep.subr.bf16.mxu0 0
        %387 = vmatpush1.bf16.msra.mxu0 0
        %388 = vmatprep.subr.bf16.mxu0 0
        %389 = vmatpush1.bf16.msra.mxu0 0
        %390 = vmatprep.subr.bf16.mxu0 0
        %391 = vmatpush1.bf16.msra.mxu0 0
        %392 = vmatprep.subr.bf16.mxu0 0
        %393 = vmatpush1.bf16.msra.mxu0 0
        %394 = vmatprep.mubr.bf16.mxu0 0
        %395 = vmatmul.mubr.bf16.gmra.mrb[0].mxu0 %v360
        %v396 = vpop.f32.mrb[0].mxu0
        %v397 = vadd.f32 0.0, %v396
        %v398 = vpop.f32.mrb[0].mxu0
        %v399 = vadd.f32 0.0, %v398
        %v400 = vpop.f32.mrb[0].mxu0
        %v401 = vpop.f32.mrb[0].mxu0
        %402 = vdwg.mxu0
        %v404 = vunpack.c.l.b16 %v345
        %v405 = vunpack.c.h.b16 %v345
        %v406 = vpack.c.b16 %v404, %v404
        %v407 = vpack.c.b16 %v405, %v405
        %v442 = vunpack.c.l.b16 %v313
        %v443 = vunpack.c.h.b16 %v313
        %v444 = vunpack.c.l.b16 %v314
        %v445 = vunpack.c.h.b16 %v314
        %v446 = vunpack.c.l.b16 %v315
        %v447 = vunpack.c.h.b16 %v315
        %v448 = vunpack.c.l.b16 %v316
        %v449 = vunpack.c.h.b16 %v316
        %v450 = vunpack.c.l.b16 %v317
        %v451 = vunpack.c.h.b16 %v317
        %v452 = vunpack.c.l.b16 %v318
        %v453 = vunpack.c.h.b16 %v318
        %v454 = vunpack.c.l.b16 %v319
        %v455 = vunpack.c.h.b16 %v319
        %v456 = vunpack.c.l.b16 %v320
        %v457 = vunpack.c.h.b16 %v320
        %v458 = vunpack.c.l.b16 %v321
        %v459 = vunpack.c.h.b16 %v321
        %v460 = vunpack.c.l.b16 %v322
        %v461 = vunpack.c.h.b16 %v322
        %v462 = vunpack.c.l.b16 %v323
        %v463 = vunpack.c.h.b16 %v323
        %v464 = vunpack.c.l.b16 %v324
        %v465 = vunpack.c.h.b16 %v324
        %v466 = vunpack.c.l.b16 %v325
        %v467 = vunpack.c.h.b16 %v325
        %v468 = vunpack.c.l.b16 %v326
        %v469 = vunpack.c.h.b16 %v326
        %v470 = vunpack.c.l.b16 %v327
        %v471 = vunpack.c.h.b16 %v327
        %v472 = vunpack.c.l.b16 %v328
        %v473 = vunpack.c.h.b16 %v328
        %v474 = vunpack.c.l.b16 %v329
        %v475 = vunpack.c.h.b16 %v329
        %v476 = vunpack.c.l.b16 %v330
        %v477 = vunpack.c.h.b16 %v330
        %v478 = vunpack.c.l.b16 %v331
        %v479 = vunpack.c.h.b16 %v331
        %v480 = vunpack.c.l.b16 %v332
        %v481 = vunpack.c.h.b16 %v332
        %v482 = vunpack.c.l.b16 %v333
        %v483 = vunpack.c.h.b16 %v333
        %v484 = vunpack.c.l.b16 %v334
        %v485 = vunpack.c.h.b16 %v334
        %v486 = vunpack.c.l.b16 %v335
        %v487 = vunpack.c.h.b16 %v335
        %v488 = vunpack.c.l.b16 %v336
        %v489 = vunpack.c.h.b16 %v336
        %v490 = vunpack.c.l.b16 %v337
        %v491 = vunpack.c.h.b16 %v337
        %v492 = vunpack.c.l.b16 %v338
        %v493 = vunpack.c.h.b16 %v338
        %v494 = vunpack.c.l.b16 %v339
        %v495 = vunpack.c.h.b16 %v339
        %v496 = vunpack.c.l.b16 %v340
        %v497 = vunpack.c.h.b16 %v340
        %v498 = vunpack.c.l.b16 %v341
        %v499 = vunpack.c.h.b16 %v341
        %v500 = vunpack.c.l.b16 %v342
        %v501 = vunpack.c.h.b16 %v342
        %v502 = vunpack.c.l.b16 %v343
        %v503 = vunpack.c.h.b16 %v343
        %v504 = vunpack.c.l.b16 %v344
        %v505 = vunpack.c.h.b16 %v344
        %v506 = vpack.c.b16 %v444, %v442
        %v507 = vpack.c.b16 %v445, %v443
        %v508 = vpack.c.b16 %v448, %v446
        %v509 = vpack.c.b16 %v449, %v447
        %v510 = vpack.c.b16 %v452, %v450
        %v511 = vpack.c.b16 %v453, %v451
        %v512 = vpack.c.b16 %v456, %v454
        %v513 = vpack.c.b16 %v457, %v455
        %v514 = vpack.c.b16 %v460, %v458
        %v515 = vpack.c.b16 %v461, %v459
        %v516 = vpack.c.b16 %v464, %v462
        %v517 = vpack.c.b16 %v465, %v463
        %v518 = vpack.c.b16 %v468, %v466
        %v519 = vpack.c.b16 %v469, %v467
        %v520 = vpack.c.b16 %v472, %v470
        %v521 = vpack.c.b16 %v473, %v471
        %v522 = vpack.c.b16 %v476, %v474
        %v523 = vpack.c.b16 %v477, %v475
        %v524 = vpack.c.b16 %v480, %v478
        %v525 = vpack.c.b16 %v481, %v479
        %v526 = vpack.c.b16 %v484, %v482
        %v527 = vpack.c.b16 %v485, %v483
        %v528 = vpack.c.b16 %v488, %v486
        %v529 = vpack.c.b16 %v489, %v487
        %v530 = vpack.c.b16 %v492, %v490
        %v531 = vpack.c.b16 %v493, %v491
        %v532 = vpack.c.b16 %v496, %v494
        %v533 = vpack.c.b16 %v497, %v495
        %v534 = vpack.c.b16 %v500, %v498
        %v535 = vpack.c.b16 %v501, %v499
        %v536 = vpack.c.b16 %v504, %v502
        %v537 = vpack.c.b16 %v505, %v503
        %570 = vmatprep.subr.bf16.mxu0 %v507
        %571 = vmatpush1.bf16.msra.mxu0 %v506
        %572 = vmatprep.subr.bf16.mxu0 %v509
        %573 = vmatpush1.bf16.msra.mxu0 %v508
        %574 = vmatprep.subr.bf16.mxu0 %v511
        %575 = vmatpush1.bf16.msra.mxu0 %v510
        %576 = vmatprep.subr.bf16.mxu0 %v513
        %577 = vmatpush1.bf16.msra.mxu0 %v512
        %578 = vmatprep.subr.bf16.mxu0 %v515
        %579 = vmatpush1.bf16.msra.mxu0 %v514
        %580 = vmatprep.subr.bf16.mxu0 %v517
        %581 = vmatpush1.bf16.msra.mxu0 %v516
        %582 = vmatprep.subr.bf16.mxu0 %v519
        %583 = vmatpush1.bf16.msra.mxu0 %v518
        %584 = vmatprep.subr.bf16.mxu0 %v521
        %585 = vmatpush1.bf16.msra.mxu0 %v520
        %586 = vmatprep.subr.bf16.mxu0 %v523
        %587 = vmatpush1.bf16.msra.mxu0 %v522
        %588 = vmatprep.subr.bf16.mxu0 %v525
        %589 = vmatpush1.bf16.msra.mxu0 %v524
        %590 = vmatprep.subr.bf16.mxu0 %v527
        %591 = vmatpush1.bf16.msra.mxu0 %v526
        %592 = vmatprep.subr.bf16.mxu0 %v529
        %593 = vmatpush1.bf16.msra.mxu0 %v528
        %594 = vmatprep.subr.bf16.mxu0 %v531
        %595 = vmatpush1.bf16.msra.mxu0 %v530
        %596 = vmatprep.subr.bf16.mxu0 %v533
        %597 = vmatpush1.bf16.msra.mxu0 %v532
        %598 = vmatprep.subr.bf16.mxu0 %v535
        %599 = vmatpush1.bf16.msra.mxu0 %v534
        %600 = vmatprep.subr.bf16.mxu0 %v537
        %601 = vmatpush1.bf16.msra.mxu0 %v536
        %602 = vmatprep.mubr.bf16.mxu0 %v407
        %603 = vmatmul.mubr.bf16.gmra.mrb[0].mxu0 %v406
        %v604 = vpop.f32.mrb[0].mxu0
        %v605 = vadd.f32 %v397, %v604
        %v606 = vpop.f32.mrb[0].mxu0
        %v607 = vadd.f32 %v399, %v606
        %v608 = vpop.f32.mrb[0].mxu0
        %v609 = vpop.f32.mrb[0].mxu0
        %610 = vdwg.mxu0
        %v611 = vmax.f32 %v605, 0.0
        %v612 = vmax.f32 %v607, 0.0
        %613 = vst [vmem:[%s307] sm:$0xff] %v611
        %614 = vst [vmem:[%s307 + $0x8] sm:$0xff] %v612
        %s615 = scalar_lea.vmem %s265, 8 [#allocation5]
        %v616 = vld [vmem:[%s615] sm:$0xff]
        %s617 = scalar_lea.vmem [#allocation2], 16
        %v618 = vld [vmem:[%s617] sm:$0xff]
        %v619 = vld [vmem:[%s617 + $0x8] sm:$0xff]
        %v622 = vunpack.c.l.b16 %v618
        %v623 = vunpack.c.h.b16 %v618
        %v624 = vunpack.c.l.b16 %v619
        %v625 = vunpack.c.h.b16 %v619
        %v626 = vpack.c.b16 %v624, %v622
        %v627 = vpack.c.b16 %v625, %v623
        %630 = vmatprep.subr.bf16.mxu0 %v627
        %631 = vmatpush1.bf16.msra.mxu0 %v626
        %632 = vmatprep.subr.bf16.mxu0 0
        %633 = vmatpush1.bf16.msra.mxu0 0
        %634 = vmatprep.subr.bf16.mxu0 0
        %635 = vmatpush1.bf16.msra.mxu0 0
        %636 = vmatprep.subr.bf16.mxu0 0
        %637 = vmatpush1.bf16.msra.mxu0 0
        %638 = vmatprep.subr.bf16.mxu0 0
        %639 = vmatpush1.bf16.msra.mxu0 0
        %640 = vmatprep.subr.bf16.mxu0 0
        %641 = vmatpush1.bf16.msra.mxu0 0
        %642 = vmatprep.subr.bf16.mxu0 0
        %643 = vmatpush1.bf16.msra.mxu0 0
        %644 = vmatprep.subr.bf16.mxu0 0
        %645 = vmatpush1.bf16.msra.mxu0 0
        %646 = vmatprep.subr.bf16.mxu0 0
        %647 = vmatpush1.bf16.msra.mxu0 0
        %648 = vmatprep.subr.bf16.mxu0 0
        %649 = vmatpush1.bf16.msra.mxu0 0
        %650 = vmatprep.subr.bf16.mxu0 0
        %651 = vmatpush1.bf16.msra.mxu0 0
        %652 = vmatprep.subr.bf16.mxu0 0
        %653 = vmatpush1.bf16.msra.mxu0 0
        %654 = vmatprep.subr.bf16.mxu0 0
        %655 = vmatpush1.bf16.msra.mxu0 0
        %656 = vmatprep.subr.bf16.mxu0 0
        %657 = vmatpush1.bf16.msra.mxu0 0
        %658 = vmatprep.subr.bf16.mxu0 0
        %659 = vmatpush1.bf16.msra.mxu0 0
        %660 = vmatprep.subr.bf16.mxu0 0
        %661 = vmatpush1.bf16.msra.mxu0 0
        %662 = vmatprep.mubr.bf16.mxu0 0
        %663 = vmatmul.mubr.bf16.gmra.mrb[0].mxu0 %v360
        %v664 = vpop.f32.mrb[0].mxu0
        %v665 = vadd.f32 0.0, %v664
        %v666 = vpop.f32.mrb[0].mxu0
        %v667 = vadd.f32 0.0, %v666
        %v668 = vpop.f32.mrb[0].mxu0
        %v669 = vpop.f32.mrb[0].mxu0
        %670 = vdwg.mxu0
        %v672 = vunpack.c.l.b16 %v616
        %v673 = vunpack.c.h.b16 %v616
        %v674 = vpack.c.b16 %v672, %v672
        %v675 = vpack.c.b16 %v673, %v673
        %678 = vmatprep.subr.bf16.mxu0 %v507
        %679 = vmatpush1.bf16.msra.mxu0 %v506
        %680 = vmatprep.subr.bf16.mxu0 %v509
        %681 = vmatpush1.bf16.msra.mxu0 %v508
        %682 = vmatprep.subr.bf16.mxu0 %v511
        %683 = vmatpush1.bf16.msra.mxu0 %v510
        %684 = vmatprep.subr.bf16.mxu0 %v513
        %685 = vmatpush1.bf16.msra.mxu0 %v512
        %686 = vmatprep.subr.bf16.mxu0 %v515
        %687 = vmatpush1.bf16.msra.mxu0 %v514
        %688 = vmatprep.subr.bf16.mxu0 %v517
        %689 = vmatpush1.bf16.msra.mxu0 %v516
        %690 = vmatprep.subr.bf16.mxu0 %v519
        %691 = vmatpush1.bf16.msra.mxu0 %v518
        %692 = vmatprep.subr.bf16.mxu0 %v521
        %693 = vmatpush1.bf16.msra.mxu0 %v520
        %694 = vmatprep.subr.bf16.mxu0 %v523
        %695 = vmatpush1.bf16.msra.mxu0 %v522
        %696 = vmatprep.subr.bf16.mxu0 %v525
        %697 = vmatpush1.bf16.msra.mxu0 %v524
        %698 = vmatprep.subr.bf16.mxu0 %v527
        %699 = vmatpush1.bf16.msra.mxu0 %v526
        %700 = vmatprep.subr.bf16.mxu0 %v529
        %701 = vmatpush1.bf16.msra.mxu0 %v528
        %702 = vmatprep.subr.bf16.mxu0 %v531
        %703 = vmatpush1.bf16.msra.mxu0 %v530
        %704 = vmatprep.subr.bf16.mxu0 %v533
        %705 = vmatpush1.bf16.msra.mxu0 %v532
        %706 = vmatprep.subr.bf16.mxu0 %v535
        %707 = vmatpush1.bf16.msra.mxu0 %v534
        %708 = vmatprep.subr.bf16.mxu0 %v537
        %709 = vmatpush1.bf16.msra.mxu0 %v536
        %710 = vmatprep.mubr.bf16.mxu0 %v675
        %711 = vmatmul.mubr.bf16.gmra.mrb[0].mxu0 %v674
        %v712 = vpop.f32.mrb[0].mxu0
        %v713 = vadd.f32 %v665, %v712
        %v714 = vpop.f32.mrb[0].mxu0
        %v715 = vadd.f32 %v667, %v714
        %v716 = vpop.f32.mrb[0].mxu0
        %v717 = vpop.f32.mrb[0].mxu0
        %718 = vdwg.mxu0
        %v719 = vmax.f32 %v713, 0.0
        %v720 = vmax.f32 %v715, 0.0
        %s721 = scalar_lea.vmem %s307, 16 [#allocation10]
        %722 = vst [vmem:[%s721] sm:$0xff] %v719
        %723 = vst [vmem:[%s721 + $0x8] sm:$0xff] %v720
        %s724 = sand.u32 %s146, 1
        %s725 = scalar_lea.sflag [#allocation4], %s724
        %s726 = sand.u32 %s146, 1
        %s727 = smul.addr %s726, 32
        %s728 = scalar_lea.vmem [#allocation10], %s727
        // Predicated region
        $region53: #{tpu_custom_call.1} parent=35 // pred_check
          %p729 = pneg %p156
        $region54: #{tpu_custom_call.1} parent=35 // pred_check_branch
          %731 = sbr.rel (%p729) target = $region56
        $region55: #{tpu_custom_call.1} parent=35 // pred_region
          %s732 = smul.u32 2, %s27
          %s734 = ssub.s32 512, 512
          %735 = vsyncadd %s725, %s734
          %s736 = smul.addr %s28, 2
          %s737 = smul.addr %s732, 4
          %s738 = sadd.s32 %s736, %s737
          %s739 = smul.addr %s738, 128
          %s740 = scalar_lea.hbm %s4, %s739
          %s741 = sshll.u32 %s728, 4
          %s742 = int_to_ptr.vmem [resolvable:$true] %s741
          %747 = dma.vmem_to_hbm [thread:$0]  %s742, 512, %s740, %s725, 256, 512, 16
        $region56: #{tpu_custom_call.1} parent=35 // pred_fallthru
          _
      $region36: #{tpu_custom_call.1} parent=5 // pred_fallthru
        _
      %p748 = scmp.le.s32.totalorder 2, %s18
      // Predicated region
      $region57: #{tpu_custom_call.1} parent=5 // pred_check
        %p749 = pneg %p748
      $region58: #{tpu_custom_call.1} parent=5 // pred_check_branch
        %751 = sbr.rel (%p749) target = $region60
      $region59: #{tpu_custom_call.1} parent=5 // pred_region
        %s752 = ssub.s32 %s18, 2
        // Predicated region
        $region61: #{tpu_custom_call.1} parent=59 // pred_check
          %p753 = pneg %p162
        $region62: #{tpu_custom_call.1} parent=59 // pred_check_branch
          %755 = sbr.rel (%p753) target = $region64
        $region63: #{tpu_custom_call.1} parent=59 // pred_region
          %s756 = sand.u32 %s147, 1
          %s757 = scalar_lea.sflag [#allocation4], %s756
          %s758 = sand.u32 %s147, 1
          %s759 = smul.addr %s758, 32
          %s760 = scalar_lea.vmem [#allocation10], %s759
          %761 = dma.done %s757, 512
        $region64: #{tpu_custom_call.1} parent=59 // pred_fallthru
          _
      $region60: #{tpu_custom_call.1} parent=5 // pred_fallthru
        _
    $region6: #{tpu_custom_call.1} parent=1 // loop_footer
      %s22 = sadd.s32 1, %s18
    $region7: #{tpu_custom_call.1} parent=1 // loop_footer_branch
      %17 = sbr.rel target = $region3
    $region8: #{tpu_custom_call.1} parent=1 // loop_exit
      _
    %762 = vsyncpa [#allocation3], 1
    %s763 = scalar_lea.sflag [#allocation3], 1
    %764 = vsyncpa %s763, 1
    %765 = vsyncpa [#allocation6], 1
    %s766 = scalar_lea.sflag [#allocation6], 1
    %767 = vsyncpa %s766, 1
    %768 = vsyncpa [#allocation9], 1
    %769 = vsyncpa [#allocation4], 1
    %s770 = scalar_lea.sflag [#allocation4], 1
    %771 = vsyncpa %s770, 1

</llo_original>
